<compile_context>
chip_gen: v5e
topology: v5e:2x2
jax: 0.10.0
libtpu: 0.0.40
codegen_flags: <defaults>
</compile_context>

<pallas_src>
import math

import jax
import jax.numpy as jnp
from jax.experimental import pallas as pl
from jax.experimental.pallas import tpu as pltpu

H1, H2 = 512, 256            # hidden widths of the MLP
OUT_PAD = 128                # lane-dense padding of the scalar output column
W1_RESIDENT_BYTES = 8 << 20  # keep W1 fully VMEM-resident up to 8 MiB (bf16)


def _leaky_relu(x, slope=0.2):
    return jnp.where(x > 0, x, slope * x)


def _round_up(n, m):
    return (n + m - 1) // m * m


# ---------------------------------------------------------------------------
# Kernels
# ---------------------------------------------------------------------------
def _disc_kernel_resident(x_ref, w1_ref, b1_ref, w2_ref, b2_ref, w3_ref,
                          b3_ref, out_ref):
    """grid = (batch_tile i [parallel],); W1 fully VMEM-resident."""
    h1 = jnp.dot(x_ref[...], w1_ref[...],
                 preferred_element_type=jnp.float32) + b1_ref[...]
    h1 = _leaky_relu(h1)

    h2 = jnp.dot(h1.astype(w2_ref.dtype), w2_ref[...],
                 preferred_element_type=jnp.float32) + b2_ref[...]
    h2 = _leaky_relu(h2)

    # Lane-dense final layer: (TB, 256) x (256, 128); only column 0 is real.
    h3 = jnp.dot(h2.astype(w3_ref.dtype), w3_ref[...],
                 preferred_element_type=jnp.float32) + b3_ref[...]
    out_ref[...] = jax.nn.sigmoid(h3).astype(out_ref.dtype)


def _disc_kernel_ktiled(x_ref, w1_ref, b1_ref, w2_ref, b2_ref, w3_ref, b3_ref,
                        out_ref, h1_acc_ref):
    """grid = (batch_tile i [parallel], k_tile k [arbitrary, reduction])."""
    k = pl.program_id(1)

    @pl.when(k == 0)
    def _():
        # Seed the accumulator with the bias -> no extra add in the epilogue.
        h1_acc_ref[...] = jnp.broadcast_to(b1_ref[...], h1_acc_ref.shape)

    # Layer 1 (K-tiled): bf16 MXU matmul, f32 accumulation in VMEM scratch.
    h1_acc_ref[...] += jnp.dot(x_ref[...], w1_ref[...],
                               preferred_element_type=jnp.float32)

    @pl.when(k == pl.num_programs(1) - 1)
    def _():
        h1 = _leaky_relu(h1_acc_ref[...])
        h2 = jnp.dot(h1.astype(w2_ref.dtype), w2_ref[...],
                     preferred_element_type=jnp.float32) + b2_ref[...]
        h2 = _leaky_relu(h2)
        h3 = jnp.dot(h2.astype(w3_ref.dtype), w3_ref[...],
                     preferred_element_type=jnp.float32) + b3_ref[...]
        out_ref[...] = jax.nn.sigmoid(h3).astype(out_ref.dtype)


# ---------------------------------------------------------------------------
# Wrapper
# ---------------------------------------------------------------------------
def _pick_batch_tiling(B, batch_tile):
    """TB: multiple of 16 (bf16 packing); >= 2 tiles when B >= 32 (v7x 2 TCs)."""
    if B >= batch_tile:
        TB = batch_tile
        B_pad = _round_up(B, TB)
        if B_pad // TB < 2 and (B_pad // 2) % 16 == 0:
            TB = B_pad // 2            # e.g. B == batch_tile exactly -> split
    elif B >= 32:
        B_pad = _round_up(B, 32)
        TB = B_pad // 2                # two 16-aligned tiles -> both TCs busy
    else:
        TB = _round_up(B, 16)          # 16, not 8: clean bf16 vreg packing
        B_pad = TB
    return TB, B_pad


def make_discriminator(params, *, batch_tile=256, k_tile=1024):
    """Pads/casts the weights once and returns a jitted forward(img) -> (B, 1)."""
    w1, b1, w2, b2, w3, b3 = params
    D = w1.shape[0]

    # Static feature-dim tiling decision.
    d128 = _round_up(D, 128)
    resident = d128 * H1 * 2 <= W1_RESIDENT_BYTES   # bf16 W1 fits in VMEM
    if resident:
        TK = D_pad = d128
    else:
        TK = min(k_tile, d128)
        D_pad = _round_up(D, TK)

    # Weight padding / casts hoisted out of the per-call path (done once).
    w1p = jnp.pad(w1.astype(jnp.bfloat16), ((0, D_pad - D), (0, 0)))
    w2b = w2.astype(jnp.bfloat16)
    w3p = jnp.zeros((H2, OUT_PAD), jnp.bfloat16).at[:, :1].set(
        w3.astype(jnp.bfloat16).reshape(H2, 1))
    b1r = b1.reshape(1, H1).astype(jnp.float32)
    b2r = b2.reshape(1, H2).astype(jnp.float32)
    b3p = jnp.zeros((1, OUT_PAD), jnp.float32).at[:, :1].set(
        jnp.asarray(b3, jnp.float32).reshape(1, 1))

    @jax.jit
    def forward(img):
        B = img.shape[0]
        assert math.prod(img.shape[1:]) == D, "img feature size mismatch"

        TB, B_pad = _pick_batch_tiling(B, batch_tile)

        # Flatten + bf16 cast + pad: fused into one pass by XLA under jit.
        x = img.reshape(B, D).astype(jnp.bfloat16)
        x = jnp.pad(x, ((0, B_pad - B), (0, D_pad - D)))

        flops = 2 * B_pad * (D_pad * H1 + H1 * H2 + H2 * OUT_PAD)
        weight_bytes_once = (w2b.size + w3p.size) * 2 + (H1 + H2 + OUT_PAD) * 4
        io_bytes = x.size * 2 + B_pad * OUT_PAD * 4

        if resident:
            out = pl.pallas_call(
                _disc_kernel_resident,
                out_shape=jax.ShapeDtypeStruct((B_pad, OUT_PAD), jnp.float32),
                grid=(B_pad // TB,),
                in_specs=[
                    pl.BlockSpec((TB, D_pad), lambda i: (i, 0)),     # x tile
                    pl.BlockSpec((D_pad, H1), lambda i: (0, 0)),     # W1 resident
                    pl.BlockSpec((1, H1), lambda i: (0, 0)),         # b1
                    pl.BlockSpec((H1, H2), lambda i: (0, 0)),        # W2
                    pl.BlockSpec((1, H2), lambda i: (0, 0)),         # b2
                    pl.BlockSpec((H2, OUT_PAD), lambda i: (0, 0)),   # W3 padded
                    pl.BlockSpec((1, OUT_PAD), lambda i: (0, 0)),    # b3 padded
                ],
                out_specs=pl.BlockSpec((TB, OUT_PAD), lambda i: (i, 0)),
                compiler_params=pltpu.CompilerParams(
                    dimension_semantics=("parallel",)),
                cost_estimate=pl.CostEstimate(
                    flops=flops,
                    transcendentals=B_pad * OUT_PAD,
                    bytes_accessed=io_bytes + w1p.size * 2 + weight_bytes_once),
            )(x, w1p, b1r, w2b, b2r, w3p, b3p)
        else:
            out = pl.pallas_call(
                _disc_kernel_ktiled,
                out_shape=jax.ShapeDtypeStruct((B_pad, OUT_PAD), jnp.float32),
                grid=(B_pad // TB, D_pad // TK),
                in_specs=[
                    pl.BlockSpec((TB, TK), lambda i, k: (i, k)),       # x tile
                    pl.BlockSpec((TK, H1), lambda i, k: (k, 0)),       # W1 K-tile
                    pl.BlockSpec((1, H1), lambda i, k: (0, 0)),        # b1
                    pl.BlockSpec((H1, H2), lambda i, k: (0, 0)),       # W2
                    pl.BlockSpec((1, H2), lambda i, k: (0, 0)),        # b2
                    pl.BlockSpec((H2, OUT_PAD), lambda i, k: (0, 0)),  # W3 padded
                    pl.BlockSpec((1, OUT_PAD), lambda i, k: (0, 0)),   # b3 padded
                ],
                out_specs=pl.BlockSpec((TB, OUT_PAD), lambda i, k: (i, 0)),
                scratch_shapes=[pltpu.VMEM((TB, H1), jnp.float32)],
                compiler_params=pltpu.CompilerParams(
                    dimension_semantics=("parallel", "arbitrary")),
                cost_estimate=pl.CostEstimate(
                    flops=flops,
                    transcendentals=B_pad * OUT_PAD,
                    # W1 really is re-streamed once per batch tile here.
                    bytes_accessed=io_bytes
                    + (B_pad // TB) * w1p.size * 2 + weight_bytes_once),
            )(x, w1p, b1r, w2b, b2r, w3p, b3p)

        return out[:B, :1]

    return forward


def discriminator_forward(img, params, *, batch_tile=256, k_tile=1024):
    """One-shot convenience wrapper (prefer make_discriminator for reuse)."""
    return make_discriminator(params, batch_tile=batch_tile, k_tile=k_tile)(img)


# ---------------------------------------------------------------------------
# Reference + init
# ---------------------------------------------------------------------------
def _reference_forward(img, params):
    """Pure-JAX f32 reference for a correctness check."""
    w1, b1, w2, b2, w3, b3 = params
    x = img.reshape(img.shape[0], -1)
    h = x @ w1 + b1
    h = jnp.where(h > 0, h, 0.2 * h)
    h = h @ w2 + b2
    h = jnp.where(h > 0, h, 0.2 * h)
    return jax.nn.sigmoid(h @ w3 + b3)


def init_params(key, in_dim):
    """Deterministic init mimicking nn.Linear default (uniform +-1/sqrt(fan_in))."""
    dims = [(in_dim, H1), (H1, H2), (H2, 1)]
    params = []
    for fan_in, fan_out in dims:
        kw, kb, key = jax.random.split(key, 3)
        bound = 1.0 / jnp.sqrt(float(fan_in))
        w = jax.random.uniform(kw, (fan_in, fan_out), jnp.float32, -bound, bound)
        b = jax.random.uniform(kb, (1, fan_out), jnp.float32, -bound, bound)
        params.extend([w, b])
    return tuple(params)


if __name__ == "__main__":
    key = jax.random.PRNGKey(0)
    k_img, k_par = jax.random.split(key)

    # Small synthetic image batch consistent with img_shape = (C, H, W)
    B, C, H, W = 2, 4, 16, 16
    img = jax.random.normal(k_img, (B, C, H, W), dtype=jnp.float32)

    params = init_params(k_par, C * H * W)

    forward = make_discriminator(params)            # weight prep done once
    validity = jax.block_until_ready(forward(img))  # compile + run
    validity = jax.block_until_ready(forward(img))  # cached jit, cached weights

    assert validity.shape == (B, 1)
    assert bool(jnp.all((validity >= 0.0) & (validity <= 1.0)))

    # Numerical check against the pure-JAX f32 reference (bf16 MXU tolerance).
    ref = _reference_forward(img, params)
    assert bool(jnp.allclose(validity, ref, atol=3e-2)), (validity, ref)

    print("KERNEL_OK")
</pallas_src>

<mosaic_0001>
module attributes {stable_mosaic.version = 11 : i64} {
  func.func @_disc_kernel_resident(%arg0: i32, %arg1: memref<16x1024xbf16, #tpu.memory_space<vmem>>, %arg2: memref<1024x512xbf16, #tpu.memory_space<vmem>>, %arg3: memref<1x512xf32, #tpu.memory_space<vmem>>, %arg4: memref<512x256xbf16, #tpu.memory_space<vmem>>, %arg5: memref<1x256xf32, #tpu.memory_space<vmem>>, %arg6: memref<256x128xbf16, #tpu.memory_space<vmem>>, %arg7: memref<1x128xf32, #tpu.memory_space<vmem>>, %arg8: memref<16x128xf32, #tpu.memory_space<vmem>>) attributes {dimension_semantics = [#tpu.dimension_semantics<parallel>], iteration_bounds = array<i64: 1>, scalar_prefetch = 0 : i64, scratch_operands = 0 : i64, tpu.core_type = #tpu.core_type<tc>, window_params = [{transform_indices = @transform_0, window_bounds = array<i64: 16, 1024>}, {pipeline_mode = #tpu.pipeline_mode<synchronous>, transform_indices = @transform_1, window_bounds = array<i64: 1024, 512>}, {pipeline_mode = #tpu.pipeline_mode<synchronous>, transform_indices = @transform_2, window_bounds = array<i64: 1, 512>}, {pipeline_mode = #tpu.pipeline_mode<synchronous>, transform_indices = @transform_3, window_bounds = array<i64: 512, 256>}, {pipeline_mode = #tpu.pipeline_mode<synchronous>, transform_indices = @transform_4, window_bounds = array<i64: 1, 256>}, {pipeline_mode = #tpu.pipeline_mode<synchronous>, transform_indices = @transform_5, window_bounds = array<i64: 256, 128>}, {pipeline_mode = #tpu.pipeline_mode<synchronous>, transform_indices = @transform_6, window_bounds = array<i64: 1, 128>}, {transform_indices = @transform_7, window_bounds = array<i64: 16, 128>}]} {
    %c0 = arith.constant 0 : index
    %c0_0 = arith.constant 0 : index
    %0 = vector.load %arg1[%c0, %c0_0] : memref<16x1024xbf16, #tpu.memory_space<vmem>>, vector<16x1024xbf16>
    %c0_1 = arith.constant 0 : index
    %c0_2 = arith.constant 0 : index
    %1 = vector.load %arg2[%c0_1, %c0_2] : memref<1024x512xbf16, #tpu.memory_space<vmem>>, vector<1024x512xbf16>
    %cst = arith.constant dense<0.000000e+00> : vector<16x512xf32>
    %2 = tpu.matmul %0, %1, %cst {dimension_numbers = #tpu.dot_dimension_numbers<[1], [0], [0], [1], [0, 0, 1, 1], [], []>} : vector<16x1024xbf16>, vector<1024x512xbf16>, vector<16x512xf32> -> vector<16x512xf32>
    %c0_3 = arith.constant 0 : index
    %c0_4 = arith.constant 0 : index
    %3 = vector.load %arg3[%c0_3, %c0_4] : memref<1x512xf32, #tpu.memory_space<vmem>>, vector<1x512xf32>
    %4 = vector.broadcast %3 : vector<1x512xf32> to vector<16x512xf32>
    %5 = arith.addf %2, %4 : vector<16x512xf32>
    %cst_5 = arith.constant 0.000000e+00 : f32
    %6 = vector.broadcast %cst_5 : f32 to vector<16x512xf32>
    %7 = arith.cmpf ogt, %5, %6 : vector<16x512xf32>
    %cst_6 = arith.constant 2.000000e-01 : f32
    %8 = vector.broadcast %cst_6 : f32 to vector<16x512xf32>
    %9 = arith.mulf %8, %5 : vector<16x512xf32>
    %10 = arith.select %7, %5, %9 : vector<16x512xi1>, vector<16x512xf32>
    %11 = arith.truncf %10 : vector<16x512xf32> to vector<16x512xbf16>
    %c0_7 = arith.constant 0 : index
    %c0_8 = arith.constant 0 : index
    %12 = vector.load %arg4[%c0_7, %c0_8] : memref<512x256xbf16, #tpu.memory_space<vmem>>, vector<512x256xbf16>
    %cst_9 = arith.constant dense<0.000000e+00> : vector<16x256xf32>
    %13 = tpu.matmul %11, %12, %cst_9 {dimension_numbers = #tpu.dot_dimension_numbers<[1], [0], [0], [1], [0, 0, 1, 1], [], []>} : vector<16x512xbf16>, vector<512x256xbf16>, vector<16x256xf32> -> vector<16x256xf32>
    %c0_10 = arith.constant 0 : index
    %c0_11 = arith.constant 0 : index
    %14 = vector.load %arg5[%c0_10, %c0_11] : memref<1x256xf32, #tpu.memory_space<vmem>>, vector<1x256xf32>
    %15 = vector.broadcast %14 : vector<1x256xf32> to vector<16x256xf32>
    %16 = arith.addf %13, %15 : vector<16x256xf32>
    %cst_12 = arith.constant 0.000000e+00 : f32
    %17 = vector.broadcast %cst_12 : f32 to vector<16x256xf32>
    %18 = arith.cmpf ogt, %16, %17 : vector<16x256xf32>
    %cst_13 = arith.constant 2.000000e-01 : f32
    %19 = vector.broadcast %cst_13 : f32 to vector<16x256xf32>
    %20 = arith.mulf %19, %16 : vector<16x256xf32>
    %21 = arith.select %18, %16, %20 : vector<16x256xi1>, vector<16x256xf32>
    %22 = arith.truncf %21 : vector<16x256xf32> to vector<16x256xbf16>
    %c0_14 = arith.constant 0 : index
    %c0_15 = arith.constant 0 : index
    %23 = vector.load %arg6[%c0_14, %c0_15] : memref<256x128xbf16, #tpu.memory_space<vmem>>, vector<256x128xbf16>
    %cst_16 = arith.constant dense<0.000000e+00> : vector<16x128xf32>
    %24 = tpu.matmul %22, %23, %cst_16 {dimension_numbers = #tpu.dot_dimension_numbers<[1], [0], [0], [1], [0, 0, 1, 1], [], []>} : vector<16x256xbf16>, vector<256x128xbf16>, vector<16x128xf32> -> vector<16x128xf32>
    %c0_17 = arith.constant 0 : index
    %c0_18 = arith.constant 0 : index
    %25 = vector.load %arg7[%c0_17, %c0_18] : memref<1x128xf32, #tpu.memory_space<vmem>>, vector<1x128xf32>
    %26 = vector.broadcast %25 : vector<1x128xf32> to vector<16x128xf32>
    %27 = arith.addf %24, %26 : vector<16x128xf32>
    %28 = arith.negf %27 : vector<16x128xf32>
    %29 = math.exp %28 : vector<16x128xf32>
    %cst_19 = arith.constant 1.000000e+00 : f32
    %30 = vector.broadcast %cst_19 : f32 to vector<16x128xf32>
    %31 = arith.addf %30, %29 : vector<16x128xf32>
    %32 = arith.divf %30, %31 : vector<16x128xf32>
    %c0_20 = arith.constant 0 : index
    %c0_21 = arith.constant 0 : index
    %33 = vector.load %arg8[%c0_20, %c0_21] : memref<16x128xf32, #tpu.memory_space<vmem>>, vector<16x128xf32>
    tpu.vector_store %arg8[%c0_20, %c0_21], %32 {strides = array<i32>} : memref<16x128xf32, #tpu.memory_space<vmem>>, vector<16x128xf32>,
    return
  }
  func.func @transform_0(%arg0: i32) -> (i32, i32) {
    %c0_i32 = arith.constant 0 : i32
    %c0_i32_0 = arith.constant 0 : i32
    return %arg0, %c0_i32 : i32, i32
  }
  func.func @transform_1(%arg0: i32) -> (i32, i32) {
    %c0_i32 = arith.constant 0 : i32
    %c0_i32_0 = arith.constant 0 : i32
    %c0_i32_1 = arith.constant 0 : i32
    return %c0_i32, %c0_i32_0 : i32, i32
  }
  func.func @transform_2(%arg0: i32) -> (i32, i32) {
    %c0_i32 = arith.constant 0 : i32
    %c0_i32_0 = arith.constant 0 : i32
    %c0_i32_1 = arith.constant 0 : i32
    return %c0_i32, %c0_i32_0 : i32, i32
  }
  func.func @transform_3(%arg0: i32) -> (i32, i32) {
    %c0_i32 = arith.constant 0 : i32
    %c0_i32_0 = arith.constant 0 : i32
    %c0_i32_1 = arith.constant 0 : i32
    return %c0_i32, %c0_i32_0 : i32, i32
  }
  func.func @transform_4(%arg0: i32) -> (i32, i32) {
    %c0_i32 = arith.constant 0 : i32
    %c0_i32_0 = arith.constant 0 : i32
    %c0_i32_1 = arith.constant 0 : i32
    return %c0_i32, %c0_i32_0 : i32, i32
  }
  func.func @transform_5(%arg0: i32) -> (i32, i32) {
    %c0_i32 = arith.constant 0 : i32
    %c0_i32_0 = arith.constant 0 : i32
    %c0_i32_1 = arith.constant 0 : i32
    return %c0_i32, %c0_i32_0 : i32, i32
  }
  func.func @transform_6(%arg0: i32) -> (i32, i32) {
    %c0_i32 = arith.constant 0 : i32
    %c0_i32_0 = arith.constant 0 : i32
    %c0_i32_1 = arith.constant 0 : i32
    return %c0_i32, %c0_i32_0 : i32, i32
  }
  func.func @transform_7(%arg0: i32) -> (i32, i32) {
    %c0_i32 = arith.constant 0 : i32
    %c0_i32_0 = arith.constant 0 : i32
    return %arg0, %c0_i32 : i32, i32
  }
}

</mosaic_0001>

<llo_original>
// kernel: forward.1
$region0: #{forward.1}
  #allocation0 [shape = 'u32[]', space=smem, size = 0x4, offset = 0x4, fixed_abs, tag = 'smem constant byte address 0x4 - core index']
  #allocation1 [shape = 'u32[72,128]{1,0:T(1,128)}', space=vmem, size = 0x9000, scoped, tag = 'internal scratch']
  %s0 = inlined_call_operand.vmem [shape: bf16[16,1024], index: 0, kind: input, shape index: {}]
  %s1 = inlined_call_operand.hbm [shape: bf16[1024,512], index: 1, kind: input, shape index: {}]
  %s2 = inlined_call_operand.vmem [shape: f32[1,512], index: 2, kind: input, shape index: {}]
  %s3 = inlined_call_operand.hbm [shape: bf16[512,256], index: 3, kind: input, shape index: {}]
  %s4 = inlined_call_operand.vmem [shape: f32[1,256], index: 4, kind: input, shape index: {}]
  %s5 = inlined_call_operand.vmem [shape: bf16[256,128], index: 5, kind: input, shape index: {}]
  %s6 = inlined_call_operand.vmem [shape: f32[1,128], index: 6, kind: input, shape index: {}]
  %s7 = inlined_call_operand.vmem [shape: f32[16,128], index: 7, kind: output, shape index: {}]
  %s8 = sld [smem:[#allocation0]]
  $region46: #{forward.1} parent=0
    _
  %s10 = ssub.s32 1, %s8
  %s11 = scalar_select 0, %s10, %s8
  $region1: #{forward.1} parent=0
    #allocation2 [shape = 'u8[1048576]{0}', space=vmem, size = 0x100000, scoped, tag = 'input window, operand 1, single buffered']
    #allocation3 [shape = 's32[1]{0}', space=sflag, size = 0x4, scoped, tag = 'scoped memory for forward.1']
    #allocation4 [shape = 'u8[262144]{0}', space=vmem, size = 0x40000, scoped, tag = 'input window, operand 3, single buffered']
    #allocation5 [shape = 's32[1]{0}', space=sflag, size = 0x4, scoped, tag = 'scoped memory for forward.1']
    %12 = vsyncpa [#allocation3], 0
    %13 = vsyncpa [#allocation5], 0
    // Predicated region
    $region2: #{forward.1} parent=1 // pred_check
      _
    $region3: #{forward.1} parent=1 // pred_check_branch
      %15 = sbr.rel (0) target = $region5
    $region4: #{forward.1} parent=1 // pred_region
      _
    $region5: #{forward.1} parent=1 // pred_fallthru
      _
    // Predicated region
    $region6: #{forward.1} parent=1 // pred_check
      _
    $region7: #{forward.1} parent=1 // pred_check_branch
      %17 = sbr.rel (0) target = $region9
    $region8: #{forward.1} parent=1 // pred_region
      %19 = vsyncadd [#allocation3], 0
      %s20 = sshll.u32 %s1, 4
      %s21 = int_to_ptr.hbm [resolvable:$true] %s20
      %s22 = sshll.u32 [#allocation2], 4
      %s23 = int_to_ptr.vmem [resolvable:$true] %s22
      %28 = dma.hbm_to_vmem [thread:$0]  %s21, 32768, %s23, [#allocation3], 256, 256, 16
    $region9: #{forward.1} parent=1 // pred_fallthru
      _
    // Predicated region
    $region10: #{forward.1} parent=1 // pred_check
      _
    $region11: #{forward.1} parent=1 // pred_check_branch
      %30 = sbr.rel (0) target = $region13
    $region12: #{forward.1} parent=1 // pred_region
      _
    $region13: #{forward.1} parent=1 // pred_fallthru
      _
    // Predicated region
    $region14: #{forward.1} parent=1 // pred_check
      _
    $region15: #{forward.1} parent=1 // pred_check_branch
      %32 = sbr.rel (0) target = $region17
    $region16: #{forward.1} parent=1 // pred_region
      %34 = vsyncadd [#allocation5], 0
      %s35 = sshll.u32 %s3, 4
      %s36 = int_to_ptr.hbm [resolvable:$true] %s35
      %s37 = sshll.u32 [#allocation4], 4
      %s38 = int_to_ptr.vmem [resolvable:$true] %s37
      %43 = dma.hbm_to_vmem [thread:$0]  %s36, 8192, %s38, [#allocation5], 128, 128, 8
    $region17: #{forward.1} parent=1 // pred_fallthru
      _
    // Predicated region
    $region18: #{forward.1} parent=1 // pred_check
      _
    $region19: #{forward.1} parent=1 // pred_check_branch
      %45 = sbr.rel (0) target = $region21
    $region20: #{forward.1} parent=1 // pred_region
      _
    $region21: #{forward.1} parent=1 // pred_fallthru
      _
    // Predicated region
    $region22: #{forward.1} parent=1 // pred_check
      _
    $region23: #{forward.1} parent=1 // pred_check_branch
      %47 = sbr.rel (0) target = $region25
    $region24: #{forward.1} parent=1 // pred_region
      _
    $region25: #{forward.1} parent=1 // pred_fallthru
      _
    // Predicated region
    $region26: #{forward.1} parent=1 // pred_check
      _
    $region27: #{forward.1} parent=1 // pred_check_branch
      %49 = sbr.rel (0) target = $region29
    $region28: #{forward.1} parent=1 // pred_region
      _
    $region29: #{forward.1} parent=1 // pred_fallthru
      _
    // Predicated region
    $region30: #{forward.1} parent=1 // pred_check
      _
    $region31: #{forward.1} parent=1 // pred_check_branch
      %51 = sbr.rel (0) target = $region33
    $region32: #{forward.1} parent=1 // pred_region
      %53 = dma.done [#allocation3], 32768
    $region33: #{forward.1} parent=1 // pred_fallthru
      _
    // Predicated region
    $region34: #{forward.1} parent=1 // pred_check
      _
    $region35: #{forward.1} parent=1 // pred_check_branch
      %55 = sbr.rel (0) target = $region37
    $region36: #{forward.1} parent=1 // pred_region
      %57 = dma.done [#allocation5], 8192
    $region37: #{forward.1} parent=1 // pred_fallthru
      _
    %v58 = vld [vmem:[%s0] sm:$0xff]
    %v59 = vld [vmem:[%s0 + $0x8] sm:$0xff]
    %v60 = vld [vmem:[%s0 + $0x10] sm:$0xff]
    %v61 = vld [vmem:[%s0 + $0x18] sm:$0xff]
    %v62 = vld [vmem:[%s0 + $0x20] sm:$0xff]
    %v63 = vld [vmem:[%s0 + $0x28] sm:$0xff]
    %v64 = vld [vmem:[%s0 + $0x30] sm:$0xff]
    %v65 = vld [vmem:[%s0 + $0x38] sm:$0xff]
    %v66 = vld [vmem:[#allocation2] sm:$0xff]
    %v67 = vld [vmem:[#allocation2 + $0x8] sm:$0xff]
    %v68 = vld [vmem:[#allocation2 + $0x10] sm:$0xff]
    %v69 = vld [vmem:[#allocation2 + $0x18] sm:$0xff]
    %v70 = vld [vmem:[#allocation2 + $0x20] sm:$0xff]
    %v71 = vld [vmem:[#allocation2 + $0x28] sm:$0xff]
    %v72 = vld [vmem:[#allocation2 + $0x30] sm:$0xff]
    %v73 = vld [vmem:[#allocation2 + $0x38] sm:$0xff]
    %v74 = vld [vmem:[#allocation2 + $0x40] sm:$0xff]
    %v75 = vld [vmem:[#allocation2 + $0x48] sm:$0xff]
    %v76 = vld [vmem:[#allocation2 + $0x50] sm:$0xff]
    %v77 = vld [vmem:[#allocation2 + $0x58] sm:$0xff]
    %v78 = vld [vmem:[#allocation2 + $0x60] sm:$0xff]
    %v79 = vld [vmem:[#allocation2 + $0x68] sm:$0xff]
    %v80 = vld [vmem:[#allocation2 + $0x70] sm:$0xff]
    %v81 = vld [vmem:[#allocation2 + $0x78] sm:$0xff]
    %v82 = vld [vmem:[#allocation2 + $0x80] sm:$0xff]
    %v83 = vld [vmem:[#allocation2 + $0x88] sm:$0xff]
    %v84 = vld [vmem:[#allocation2 + $0x90] sm:$0xff]
    %v85 = vld [vmem:[#allocation2 + $0x98] sm:$0xff]
    %v86 = vld [vmem:[#allocation2 + $0xa0] sm:$0xff]
    %v87 = vld [vmem:[#allocation2 + $0xa8] sm:$0xff]
    %v88 = vld [vmem:[#allocation2 + $0xb0] sm:$0xff]
    %v89 = vld [vmem:[#allocation2 + $0xb8] sm:$0xff]
    %v90 = vld [vmem:[#allocation2 + $0xc0] sm:$0xff]
    %v91 = vld [vmem:[#allocation2 + $0xc8] sm:$0xff]
    %v92 = vld [vmem:[#allocation2 + $0xd0] sm:$0xff]
    %v93 = vld [vmem:[#allocation2 + $0xd8] sm:$0xff]
    %v94 = vld [vmem:[#allocation2 + $0xe0] sm:$0xff]
    %v95 = vld [vmem:[#allocation2 + $0xe8] sm:$0xff]
    %v96 = vld [vmem:[#allocation2 + $0xf0] sm:$0xff]
    %v97 = vld [vmem:[#allocation2 + $0xf8] sm:$0xff]
    %v98 = vld [vmem:[#allocation2 + $0x100] sm:$0xff]
    %v99 = vld [vmem:[#allocation2 + $0x108] sm:$0xff]
    %v100 = vld [vmem:[#allocation2 + $0x110] sm:$0xff]
    %v101 = vld [vmem:[#allocation2 + $0x118] sm:$0xff]
    %v102 = vld [vmem:[#allocation2 + $0x120] sm:$0xff]
    %v103 = vld [vmem:[#allocation2 + $0x128] sm:$0xff]
    %v104 = vld [vmem:[#allocation2 + $0x130] sm:$0xff]
    %v105 = vld [vmem:[#allocation2 + $0x138] sm:$0xff]
    %v106 = vld [vmem:[#allocation2 + $0x140] sm:$0xff]
    %v107 = vld [vmem:[#allocation2 + $0x148] sm:$0xff]
    %v108 = vld [vmem:[#allocation2 + $0x150] sm:$0xff]
    %v109 = vld [vmem:[#allocation2 + $0x158] sm:$0xff]
    %v110 = vld [vmem:[#allocation2 + $0x160] sm:$0xff]
    %v111 = vld [vmem:[#allocation2 + $0x168] sm:$0xff]
    %v112 = vld [vmem:[#allocation2 + $0x170] sm:$0xff]
    %v113 = vld [vmem:[#allocation2 + $0x178] sm:$0xff]
    %v114 = vld [vmem:[#allocation2 + $0x180] sm:$0xff]
    %v115 = vld [vmem:[#allocation2 + $0x188] sm:$0xff]
    %v116 = vld [vmem:[#allocation2 + $0x190] sm:$0xff]
    %v117 = vld [vmem:[#allocation2 + $0x198] sm:$0xff]
    %v118 = vld [vmem:[#allocation2 + $0x1a0] sm:$0xff]
    %v119 = vld [vmem:[#allocation2 + $0x1a8] sm:$0xff]
    %v120 = vld [vmem:[#allocation2 + $0x1b0] sm:$0xff]
    %v121 = vld [vmem:[#allocation2 + $0x1b8] sm:$0xff]
    %v122 = vld [vmem:[#allocation2 + $0x1c0] sm:$0xff]
    %v123 = vld [vmem:[#allocation2 + $0x1c8] sm:$0xff]
    %v124 = vld [vmem:[#allocation2 + $0x1d0] sm:$0xff]
    %v125 = vld [vmem:[#allocation2 + $0x1d8] sm:$0xff]
    %v126 = vld [vmem:[#allocation2 + $0x1e0] sm:$0xff]
    %v127 = vld [vmem:[#allocation2 + $0x1e8] sm:$0xff]
    %v128 = vld [vmem:[#allocation2 + $0x1f0] sm:$0xff]
    %v129 = vld [vmem:[#allocation2 + $0x1f8] sm:$0xff]
    %v130 = vld [vmem:[#allocation2 + $0x200] sm:$0xff]
    %v131 = vld [vmem:[#allocation2 + $0x208] sm:$0xff]
    %v132 = vld [vmem:[#allocation2 + $0x210] sm:$0xff]
    %v133 = vld [vmem:[#allocation2 + $0x218] sm:$0xff]
    %v134 = vld [vmem:[#allocation2 + $0x220] sm:$0xff]
    %v135 = vld [vmem:[#allocation2 + $0x228] sm:$0xff]
    %v136 = vld [vmem:[#allocation2 + $0x230] sm:$0xff]
    %v137 = vld [vmem:[#allocation2 + $0x238] sm:$0xff]
    %v138 = vld [vmem:[#allocation2 + $0x240] sm:$0xff]
    %v139 = vld [vmem:[#allocation2 + $0x248] sm:$0xff]
    %v140 = vld [vmem:[#allocation2 + $0x250] sm:$0xff]
    %v141 = vld [vmem:[#allocation2 + $0x258] sm:$0xff]
    %v142 = vld [vmem:[#allocation2 + $0x260] sm:$0xff]
    %v143 = vld [vmem:[#allocation2 + $0x268] sm:$0xff]
    %v144 = vld [vmem:[#allocation2 + $0x270] sm:$0xff]
    %v145 = vld [vmem:[#allocation2 + $0x278] sm:$0xff]
    %v146 = vld [vmem:[#allocation2 + $0x280] sm:$0xff]
    %v147 = vld [vmem:[#allocation2 + $0x288] sm:$0xff]
    %v148 = vld [vmem:[#allocation2 + $0x290] sm:$0xff]
    %v149 = vld [vmem:[#allocation2 + $0x298] sm:$0xff]
    %v150 = vld [vmem:[#allocation2 + $0x2a0] sm:$0xff]
    %v151 = vld [vmem:[#allocation2 + $0x2a8] sm:$0xff]
    %v152 = vld [vmem:[#allocation2 + $0x2b0] sm:$0xff]
    %v153 = vld [vmem:[#allocation2 + $0x2b8] sm:$0xff]
    %v154 = vld [vmem:[#allocation2 + $0x2c0] sm:$0xff]
    %v155 = vld [vmem:[#allocation2 + $0x2c8] sm:$0xff]
    %v156 = vld [vmem:[#allocation2 + $0x2d0] sm:$0xff]
    %v157 = vld [vmem:[#allocation2 + $0x2d8] sm:$0xff]
    %v158 = vld [vmem:[#allocation2 + $0x2e0] sm:$0xff]
    %v159 = vld [vmem:[#allocation2 + $0x2e8] sm:$0xff]
    %v160 = vld [vmem:[#allocation2 + $0x2f0] sm:$0xff]
    %v161 = vld [vmem:[#allocation2 + $0x2f8] sm:$0xff]
    %v162 = vld [vmem:[#allocation2 + $0x300] sm:$0xff]
    %v163 = vld [vmem:[#allocation2 + $0x308] sm:$0xff]
    %v164 = vld [vmem:[#allocation2 + $0x310] sm:$0xff]
    %v165 = vld [vmem:[#allocation2 + $0x318] sm:$0xff]
    %v166 = vld [vmem:[#allocation2 + $0x320] sm:$0xff]
    %v167 = vld [vmem:[#allocation2 + $0x328] sm:$0xff]
    %v168 = vld [vmem:[#allocation2 + $0x330] sm:$0xff]
    %v169 = vld [vmem:[#allocation2 + $0x338] sm:$0xff]
    %v170 = vld [vmem:[#allocation2 + $0x340] sm:$0xff]
    %v171 = vld [vmem:[#allocation2 + $0x348] sm:$0xff]
    %v172 = vld [vmem:[#allocation2 + $0x350] sm:$0xff]
    %v173 = vld [vmem:[#allocation2 + $0x358] sm:$0xff]
    %v174 = vld [vmem:[#allocation2 + $0x360] sm:$0xff]
    %v175 = vld [vmem:[#allocation2 + $0x368] sm:$0xff]
    %v176 = vld [vmem:[#allocation2 + $0x370] sm:$0xff]
    %v177 = vld [vmem:[#allocation2 + $0x378] sm:$0xff]
    %v178 = vld [vmem:[#allocation2 + $0x380] sm:$0xff]
    %v179 = vld [vmem:[#allocation2 + $0x388] sm:$0xff]
    %v180 = vld [vmem:[#allocation2 + $0x390] sm:$0xff]
    %v181 = vld [vmem:[#allocation2 + $0x398] sm:$0xff]
    %v182 = vld [vmem:[#allocation2 + $0x3a0] sm:$0xff]
    %v183 = vld [vmem:[#allocation2 + $0x3a8] sm:$0xff]
    %v184 = vld [vmem:[#allocation2 + $0x3b0] sm:$0xff]
    %v185 = vld [vmem:[#allocation2 + $0x3b8] sm:$0xff]
    %v186 = vld [vmem:[#allocation2 + $0x3c0] sm:$0xff]
    %v187 = vld [vmem:[#allocation2 + $0x3c8] sm:$0xff]
    %v188 = vld [vmem:[#allocation2 + $0x3d0] sm:$0xff]
    %v189 = vld [vmem:[#allocation2 + $0x3d8] sm:$0xff]
    %v190 = vld [vmem:[#allocation2 + $0x3e0] sm:$0xff]
    %v191 = vld [vmem:[#allocation2 + $0x3e8] sm:$0xff]
    %v192 = vld [vmem:[#allocation2 + $0x3f0] sm:$0xff]
    %v193 = vld [vmem:[#allocation2 + $0x3f8] sm:$0xff]
    %v194 = vld [vmem:[#allocation2 + $0x400] sm:$0xff]
    %v195 = vld [vmem:[#allocation2 + $0x408] sm:$0xff]
    %v196 = vld [vmem:[#allocation2 + $0x410] sm:$0xff]
    %v197 = vld [vmem:[#allocation2 + $0x418] sm:$0xff]
    %v198 = vld [vmem:[#allocation2 + $0x420] sm:$0xff]
    %v199 = vld [vmem:[#allocation2 + $0x428] sm:$0xff]
    %v200 = vld [vmem:[#allocation2 + $0x430] sm:$0xff]
    %v201 = vld [vmem:[#allocation2 + $0x438] sm:$0xff]
    %v202 = vld [vmem:[#allocation2 + $0x440] sm:$0xff]
    %v203 = vld [vmem:[#allocation2 + $0x448] sm:$0xff]
    %v204 = vld [vmem:[#allocation2 + $0x450] sm:$0xff]
    %v205 = vld [vmem:[#allocation2 + $0x458] sm:$0xff]
    %v206 = vld [vmem:[#allocation2 + $0x460] sm:$0xff]
    %v207 = vld [vmem:[#allocation2 + $0x468] sm:$0xff]
    %v208 = vld [vmem:[#allocation2 + $0x470] sm:$0xff]
    %v209 = vld [vmem:[#allocation2 + $0x478] sm:$0xff]
    %v210 = vld [vmem:[#allocation2 + $0x480] sm:$0xff]
    %v211 = vld [vmem:[#allocation2 + $0x488] sm:$0xff]
    %v212 = vld [vmem:[#allocation2 + $0x490] sm:$0xff]
    %v213 = vld [vmem:[#allocation2 + $0x498] sm:$0xff]
    %v214 = vld [vmem:[#allocation2 + $0x4a0] sm:$0xff]
    %v215 = vld [vmem:[#allocation2 + $0x4a8] sm:$0xff]
    %v216 = vld [vmem:[#allocation2 + $0x4b0] sm:$0xff]
    %v217 = vld [vmem:[#allocation2 + $0x4b8] sm:$0xff]
    %v218 = vld [vmem:[#allocation2 + $0x4c0] sm:$0xff]
    %v219 = vld [vmem:[#allocation2 + $0x4c8] sm:$0xff]
    %v220 = vld [vmem:[#allocation2 + $0x4d0] sm:$0xff]
    %v221 = vld [vmem:[#allocation2 + $0x4d8] sm:$0xff]
    %v222 = vld [vmem:[#allocation2 + $0x4e0] sm:$0xff]
    %v223 = vld [vmem:[#allocation2 + $0x4e8] sm:$0xff]
    %v224 = vld [vmem:[#allocation2 + $0x4f0] sm:$0xff]
    %v225 = vld [vmem:[#allocation2 + $0x4f8] sm:$0xff]
    %v226 = vld [vmem:[#allocation2 + $0x500] sm:$0xff]
    %v227 = vld [vmem:[#allocation2 + $0x508] sm:$0xff]
    %v228 = vld [vmem:[#allocation2 + $0x510] sm:$0xff]
    %v229 = vld [vmem:[#allocation2 + $0x518] sm:$0xff]
    %v230 = vld [vmem:[#allocation2 + $0x520] sm:$0xff]
    %v231 = vld [vmem:[#allocation2 + $0x528] sm:$0xff]
    %v232 = vld [vmem:[#allocation2 + $0x530] sm:$0xff]
    %v233 = vld [vmem:[#allocation2 + $0x538] sm:$0xff]
    %v234 = vld [vmem:[#allocation2 + $0x540] sm:$0xff]
    %v235 = vld [vmem:[#allocation2 + $0x548] sm:$0xff]
    %v236 = vld [vmem:[#allocation2 + $0x550] sm:$0xff]
    %v237 = vld [vmem:[#allocation2 + $0x558] sm:$0xff]
    %v238 = vld [vmem:[#allocation2 + $0x560] sm:$0xff]
    %v239 = vld [vmem:[#allocation2 + $0x568] sm:$0xff]
    %v240 = vld [vmem:[#allocation2 + $0x570] sm:$0xff]
    %v241 = vld [vmem:[#allocation2 + $0x578] sm:$0xff]
    %v242 = vld [vmem:[#allocation2 + $0x580] sm:$0xff]
    %v243 = vld [vmem:[#allocation2 + $0x588] sm:$0xff]
    %v244 = vld [vmem:[#allocation2 + $0x590] sm:$0xff]
    %v245 = vld [vmem:[#allocation2 + $0x598] sm:$0xff]
    %v246 = vld [vmem:[#allocation2 + $0x5a0] sm:$0xff]
    %v247 = vld [vmem:[#allocation2 + $0x5a8] sm:$0xff]
    %v248 = vld [vmem:[#allocation2 + $0x5b0] sm:$0xff]
    %v249 = vld [vmem:[#allocation2 + $0x5b8] sm:$0xff]
    %v250 = vld [vmem:[#allocation2 + $0x5c0] sm:$0xff]
    %v251 = vld [vmem:[#allocation2 + $0x5c8] sm:$0xff]
    %v252 = vld [vmem:[#allocation2 + $0x5d0] sm:$0xff]
    %v253 = vld [vmem:[#allocation2 + $0x5d8] sm:$0xff]
    %v254 = vld [vmem:[#allocation2 + $0x5e0] sm:$0xff]
    %v255 = vld [vmem:[#allocation2 + $0x5e8] sm:$0xff]
    %v256 = vld [vmem:[#allocation2 + $0x5f0] sm:$0xff]
    %v257 = vld [vmem:[#allocation2 + $0x5f8] sm:$0xff]
    %v258 = vld [vmem:[#allocation2 + $0x600] sm:$0xff]
    %v259 = vld [vmem:[#allocation2 + $0x608] sm:$0xff]
    %v260 = vld [vmem:[#allocation2 + $0x610] sm:$0xff]
    %v261 = vld [vmem:[#allocation2 + $0x618] sm:$0xff]
    %v262 = vld [vmem:[#allocation2 + $0x620] sm:$0xff]
    %v263 = vld [vmem:[#allocation2 + $0x628] sm:$0xff]
    %v264 = vld [vmem:[#allocation2 + $0x630] sm:$0xff]
    %v265 = vld [vmem:[#allocation2 + $0x638] sm:$0xff]
    %v266 = vld [vmem:[#allocation2 + $0x640] sm:$0xff]
    %v267 = vld [vmem:[#allocation2 + $0x648] sm:$0xff]
    %v268 = vld [vmem:[#allocation2 + $0x650] sm:$0xff]
    %v269 = vld [vmem:[#allocation2 + $0x658] sm:$0xff]
    %v270 = vld [vmem:[#allocation2 + $0x660] sm:$0xff]
    %v271 = vld [vmem:[#allocation2 + $0x668] sm:$0xff]
    %v272 = vld [vmem:[#allocation2 + $0x670] sm:$0xff]
    %v273 = vld [vmem:[#allocation2 + $0x678] sm:$0xff]
    %v274 = vld [vmem:[#allocation2 + $0x680] sm:$0xff]
    %v275 = vld [vmem:[#allocation2 + $0x688] sm:$0xff]
    %v276 = vld [vmem:[#allocation2 + $0x690] sm:$0xff]
    %v277 = vld [vmem:[#allocation2 + $0x698] sm:$0xff]
    %v278 = vld [vmem:[#allocation2 + $0x6a0] sm:$0xff]
    %v279 = vld [vmem:[#allocation2 + $0x6a8] sm:$0xff]
    %v280 = vld [vmem:[#allocation2 + $0x6b0] sm:$0xff]
    %v281 = vld [vmem:[#allocation2 + $0x6b8] sm:$0xff]
    %v282 = vld [vmem:[#allocation2 + $0x6c0] sm:$0xff]
    %v283 = vld [vmem:[#allocation2 + $0x6c8] sm:$0xff]
    %v284 = vld [vmem:[#allocation2 + $0x6d0] sm:$0xff]
    %v285 = vld [vmem:[#allocation2 + $0x6d8] sm:$0xff]
    %v286 = vld [vmem:[#allocation2 + $0x6e0] sm:$0xff]
    %v287 = vld [vmem:[#allocation2 + $0x6e8] sm:$0xff]
    %v288 = vld [vmem:[#allocation2 + $0x6f0] sm:$0xff]
    %v289 = vld [vmem:[#allocation2 + $0x6f8] sm:$0xff]
    %v290 = vld [vmem:[#allocation2 + $0x700] sm:$0xff]
    %v291 = vld [vmem:[#allocation2 + $0x708] sm:$0xff]
    %v292 = vld [vmem:[#allocation2 + $0x710] sm:$0xff]
    %v293 = vld [vmem:[#allocation2 + $0x718] sm:$0xff]
    %v294 = vld [vmem:[#allocation2 + $0x720] sm:$0xff]
    %v295 = vld [vmem:[#allocation2 + $0x728] sm:$0xff]
    %v296 = vld [vmem:[#allocation2 + $0x730] sm:$0xff]
    %v297 = vld [vmem:[#allocation2 + $0x738] sm:$0xff]
    %v298 = vld [vmem:[#allocation2 + $0x740] sm:$0xff]
    %v299 = vld [vmem:[#allocation2 + $0x748] sm:$0xff]
    %v300 = vld [vmem:[#allocation2 + $0x750] sm:$0xff]
    %v301 = vld [vmem:[#allocation2 + $0x758] sm:$0xff]
    %v302 = vld [vmem:[#allocation2 + $0x760] sm:$0xff]
    %v303 = vld [vmem:[#allocation2 + $0x768] sm:$0xff]
    %v304 = vld [vmem:[#allocation2 + $0x770] sm:$0xff]
    %v305 = vld [vmem:[#allocation2 + $0x778] sm:$0xff]
    %v306 = vld [vmem:[#allocation2 + $0x780] sm:$0xff]
    %v307 = vld [vmem:[#allocation2 + $0x788] sm:$0xff]
    %v308 = vld [vmem:[#allocation2 + $0x790] sm:$0xff]
    %v309 = vld [vmem:[#allocation2 + $0x798] sm:$0xff]
    %v310 = vld [vmem:[#allocation2 + $0x7a0] sm:$0xff]
    %v311 = vld [vmem:[#allocation2 + $0x7a8] sm:$0xff]
    %v312 = vld [vmem:[#allocation2 + $0x7b0] sm:$0xff]
    %v313 = vld [vmem:[#allocation2 + $0x7b8] sm:$0xff]
    %v314 = vld [vmem:[#allocation2 + $0x7c0] sm:$0xff]
    %v315 = vld [vmem:[#allocation2 + $0x7c8] sm:$0xff]
    %v316 = vld [vmem:[#allocation2 + $0x7d0] sm:$0xff]
    %v317 = vld [vmem:[#allocation2 + $0x7d8] sm:$0xff]
    %v318 = vld [vmem:[#allocation2 + $0x7e0] sm:$0xff]
    %v319 = vld [vmem:[#allocation2 + $0x7e8] sm:$0xff]
    %v320 = vld [vmem:[#allocation2 + $0x7f0] sm:$0xff]
    %v321 = vld [vmem:[#allocation2 + $0x7f8] sm:$0xff]
    %v322 = vld [vmem:[%s2] sm:$0xf]
    %v324 = vperm.slane %v322, 0
    %v325 = vperm.slane %v322, 1
    %v326 = vperm.slane %v322, 2
    %v327 = vperm.slane %v322, 3
    %v340 = vunpack.c.l.b16 %v58
    %v341 = vunpack.c.h.b16 %v58
    %v342 = vunpack.c.l.b16 %v59
    %v343 = vunpack.c.h.b16 %v59
    %v344 = vunpack.c.l.b16 %v60
    %v345 = vunpack.c.h.b16 %v60
    %v346 = vunpack.c.l.b16 %v61
    %v347 = vunpack.c.h.b16 %v61
    %v348 = vunpack.c.l.b16 %v62
    %v349 = vunpack.c.h.b16 %v62
    %v350 = vunpack.c.l.b16 %v63
    %v351 = vunpack.c.h.b16 %v63
    %v352 = vunpack.c.l.b16 %v64
    %v353 = vunpack.c.h.b16 %v64
    %v354 = vunpack.c.l.b16 %v65
    %v355 = vunpack.c.h.b16 %v65
    %v356 = vpack.c.b16 %v348, %v340
    %v357 = vpack.c.b16 %v349, %v341
    %v358 = vpack.c.b16 %v350, %v342
    %v359 = vpack.c.b16 %v351, %v343
    %v360 = vpack.c.b16 %v352, %v344
    %v361 = vpack.c.b16 %v353, %v345
    %v362 = vpack.c.b16 %v354, %v346
    %v363 = vpack.c.b16 %v355, %v347
    %v628 = vunpack.c.l.b16 %v66
    %v629 = vunpack.c.h.b16 %v66
    %v630 = vunpack.c.l.b16 %v67
    %v631 = vunpack.c.h.b16 %v67
    %v632 = vunpack.c.l.b16 %v68
    %v633 = vunpack.c.h.b16 %v68
    %v634 = vunpack.c.l.b16 %v69
    %v635 = vunpack.c.h.b16 %v69
    %v636 = vunpack.c.l.b16 %v70
    %v637 = vunpack.c.h.b16 %v70
    %v638 = vunpack.c.l.b16 %v71
    %v639 = vunpack.c.h.b16 %v71
    %v640 = vunpack.c.l.b16 %v72
    %v641 = vunpack.c.h.b16 %v72
    %v642 = vunpack.c.l.b16 %v73
    %v643 = vunpack.c.h.b16 %v73
    %v644 = vunpack.c.l.b16 %v74
    %v645 = vunpack.c.h.b16 %v74
    %v646 = vunpack.c.l.b16 %v75
    %v647 = vunpack.c.h.b16 %v75
    %v648 = vunpack.c.l.b16 %v76
    %v649 = vunpack.c.h.b16 %v76
    %v650 = vunpack.c.l.b16 %v77
    %v651 = vunpack.c.h.b16 %v77
    %v652 = vunpack.c.l.b16 %v78
    %v653 = vunpack.c.h.b16 %v78
    %v654 = vunpack.c.l.b16 %v79
    %v655 = vunpack.c.h.b16 %v79
    %v656 = vunpack.c.l.b16 %v80
    %v657 = vunpack.c.h.b16 %v80
    %v658 = vunpack.c.l.b16 %v81
    %v659 = vunpack.c.h.b16 %v81
    %v660 = vunpack.c.l.b16 %v82
    %v661 = vunpack.c.h.b16 %v82
    %v662 = vunpack.c.l.b16 %v83
    %v663 = vunpack.c.h.b16 %v83
    %v664 = vunpack.c.l.b16 %v84
    %v665 = vunpack.c.h.b16 %v84
    %v666 = vunpack.c.l.b16 %v85
    %v667 = vunpack.c.h.b16 %v85
    %v668 = vunpack.c.l.b16 %v86
    %v669 = vunpack.c.h.b16 %v86
    %v670 = vunpack.c.l.b16 %v87
    %v671 = vunpack.c.h.b16 %v87
    %v672 = vunpack.c.l.b16 %v88
    %v673 = vunpack.c.h.b16 %v88
    %v674 = vunpack.c.l.b16 %v89
    %v675 = vunpack.c.h.b16 %v89
    %v676 = vunpack.c.l.b16 %v90
    %v677 = vunpack.c.h.b16 %v90
    %v678 = vunpack.c.l.b16 %v91
    %v679 = vunpack.c.h.b16 %v91
    %v680 = vunpack.c.l.b16 %v92
    %v681 = vunpack.c.h.b16 %v92
    %v682 = vunpack.c.l.b16 %v93
    %v683 = vunpack.c.h.b16 %v93
    %v684 = vunpack.c.l.b16 %v94
    %v685 = vunpack.c.h.b16 %v94
    %v686 = vunpack.c.l.b16 %v95
    %v687 = vunpack.c.h.b16 %v95
    %v688 = vunpack.c.l.b16 %v96
    %v689 = vunpack.c.h.b16 %v96
    %v690 = vunpack.c.l.b16 %v97
    %v691 = vunpack.c.h.b16 %v97
    %v692 = vunpack.c.l.b16 %v98
    %v693 = vunpack.c.h.b16 %v98
    %v694 = vunpack.c.l.b16 %v99
    %v695 = vunpack.c.h.b16 %v99
    %v696 = vunpack.c.l.b16 %v100
    %v697 = vunpack.c.h.b16 %v100
    %v698 = vunpack.c.l.b16 %v101
    %v699 = vunpack.c.h.b16 %v101
    %v700 = vunpack.c.l.b16 %v102
    %v701 = vunpack.c.h.b16 %v102
    %v702 = vunpack.c.l.b16 %v103
    %v703 = vunpack.c.h.b16 %v103
    %v704 = vunpack.c.l.b16 %v104
    %v705 = vunpack.c.h.b16 %v104
    %v706 = vunpack.c.l.b16 %v105
    %v707 = vunpack.c.h.b16 %v105
    %v708 = vunpack.c.l.b16 %v106
    %v709 = vunpack.c.h.b16 %v106
    %v710 = vunpack.c.l.b16 %v107
    %v711 = vunpack.c.h.b16 %v107
    %v712 = vunpack.c.l.b16 %v108
    %v713 = vunpack.c.h.b16 %v108
    %v714 = vunpack.c.l.b16 %v109
    %v715 = vunpack.c.h.b16 %v109
    %v716 = vunpack.c.l.b16 %v110
    %v717 = vunpack.c.h.b16 %v110
    %v718 = vunpack.c.l.b16 %v111
    %v719 = vunpack.c.h.b16 %v111
    %v720 = vunpack.c.l.b16 %v112
    %v721 = vunpack.c.h.b16 %v112
    %v722 = vunpack.c.l.b16 %v113
    %v723 = vunpack.c.h.b16 %v113
    %v724 = vunpack.c.l.b16 %v114
    %v725 = vunpack.c.h.b16 %v114
    %v726 = vunpack.c.l.b16 %v115
    %v727 = vunpack.c.h.b16 %v115
    %v728 = vunpack.c.l.b16 %v116
    %v729 = vunpack.c.h.b16 %v116
    %v730 = vunpack.c.l.b16 %v117
    %v731 = vunpack.c.h.b16 %v117
    %v732 = vunpack.c.l.b16 %v118
    %v733 = vunpack.c.h.b16 %v118
    %v734 = vunpack.c.l.b16 %v119
    %v735 = vunpack.c.h.b16 %v119
    %v736 = vunpack.c.l.b16 %v120
    %v737 = vunpack.c.h.b16 %v120
    %v738 = vunpack.c.l.b16 %v121
    %v739 = vunpack.c.h.b16 %v121
    %v740 = vunpack.c.l.b16 %v122
    %v741 = vunpack.c.h.b16 %v122
    %v742 = vunpack.c.l.b16 %v123
    %v743 = vunpack.c.h.b16 %v123
    %v744 = vunpack.c.l.b16 %v124
    %v745 = vunpack.c.h.b16 %v124
    %v746 = vunpack.c.l.b16 %v125
    %v747 = vunpack.c.h.b16 %v125
    %v748 = vunpack.c.l.b16 %v126
    %v749 = vunpack.c.h.b16 %v126
    %v750 = vunpack.c.l.b16 %v127
    %v751 = vunpack.c.h.b16 %v127
    %v752 = vunpack.c.l.b16 %v128
    %v753 = vunpack.c.h.b16 %v128
    %v754 = vunpack.c.l.b16 %v129
    %v755 = vunpack.c.h.b16 %v129
    %v756 = vunpack.c.l.b16 %v130
    %v757 = vunpack.c.h.b16 %v130
    %v758 = vunpack.c.l.b16 %v131
    %v759 = vunpack.c.h.b16 %v131
    %v760 = vunpack.c.l.b16 %v132
    %v761 = vunpack.c.h.b16 %v132
    %v762 = vunpack.c.l.b16 %v133
    %v763 = vunpack.c.h.b16 %v133
    %v764 = vunpack.c.l.b16 %v134
    %v765 = vunpack.c.h.b16 %v134
    %v766 = vunpack.c.l.b16 %v135
    %v767 = vunpack.c.h.b16 %v135
    %v768 = vunpack.c.l.b16 %v136
    %v769 = vunpack.c.h.b16 %v136
    %v770 = vunpack.c.l.b16 %v137
    %v771 = vunpack.c.h.b16 %v137
    %v772 = vunpack.c.l.b16 %v138
    %v773 = vunpack.c.h.b16 %v138
    %v774 = vunpack.c.l.b16 %v139
    %v775 = vunpack.c.h.b16 %v139
    %v776 = vunpack.c.l.b16 %v140
    %v777 = vunpack.c.h.b16 %v140
    %v778 = vunpack.c.l.b16 %v141
    %v779 = vunpack.c.h.b16 %v141
    %v780 = vunpack.c.l.b16 %v142
    %v781 = vunpack.c.h.b16 %v142
    %v782 = vunpack.c.l.b16 %v143
    %v783 = vunpack.c.h.b16 %v143
    %v784 = vunpack.c.l.b16 %v144
    %v785 = vunpack.c.h.b16 %v144
    %v786 = vunpack.c.l.b16 %v145
    %v787 = vunpack.c.h.b16 %v145
    %v788 = vunpack.c.l.b16 %v146
    %v789 = vunpack.c.h.b16 %v146
    %v790 = vunpack.c.l.b16 %v147
    %v791 = vunpack.c.h.b16 %v147
    %v792 = vunpack.c.l.b16 %v148
    %v793 = vunpack.c.h.b16 %v148
    %v794 = vunpack.c.l.b16 %v149
    %v795 = vunpack.c.h.b16 %v149
    %v796 = vunpack.c.l.b16 %v150
    %v797 = vunpack.c.h.b16 %v150
    %v798 = vunpack.c.l.b16 %v151
    %v799 = vunpack.c.h.b16 %v151
    %v800 = vunpack.c.l.b16 %v152
    %v801 = vunpack.c.h.b16 %v152
    %v802 = vunpack.c.l.b16 %v153
    %v803 = vunpack.c.h.b16 %v153
    %v804 = vunpack.c.l.b16 %v154
    %v805 = vunpack.c.h.b16 %v154
    %v806 = vunpack.c.l.b16 %v155
    %v807 = vunpack.c.h.b16 %v155
    %v808 = vunpack.c.l.b16 %v156
    %v809 = vunpack.c.h.b16 %v156
    %v810 = vunpack.c.l.b16 %v157
    %v811 = vunpack.c.h.b16 %v157
    %v812 = vunpack.c.l.b16 %v158
    %v813 = vunpack.c.h.b16 %v158
    %v814 = vunpack.c.l.b16 %v159
    %v815 = vunpack.c.h.b16 %v159
    %v816 = vunpack.c.l.b16 %v160
    %v817 = vunpack.c.h.b16 %v160
    %v818 = vunpack.c.l.b16 %v161
    %v819 = vunpack.c.h.b16 %v161
    %v820 = vunpack.c.l.b16 %v162
    %v821 = vunpack.c.h.b16 %v162
    %v822 = vunpack.c.l.b16 %v163
    %v823 = vunpack.c.h.b16 %v163
    %v824 = vunpack.c.l.b16 %v164
    %v825 = vunpack.c.h.b16 %v164
    %v826 = vunpack.c.l.b16 %v165
    %v827 = vunpack.c.h.b16 %v165
    %v828 = vunpack.c.l.b16 %v166
    %v829 = vunpack.c.h.b16 %v166
    %v830 = vunpack.c.l.b16 %v167
    %v831 = vunpack.c.h.b16 %v167
    %v832 = vunpack.c.l.b16 %v168
    %v833 = vunpack.c.h.b16 %v168
    %v834 = vunpack.c.l.b16 %v169
    %v835 = vunpack.c.h.b16 %v169
    %v836 = vunpack.c.l.b16 %v170
    %v837 = vunpack.c.h.b16 %v170
    %v838 = vunpack.c.l.b16 %v171
    %v839 = vunpack.c.h.b16 %v171
    %v840 = vunpack.c.l.b16 %v172
    %v841 = vunpack.c.h.b16 %v172
    %v842 = vunpack.c.l.b16 %v173
    %v843 = vunpack.c.h.b16 %v173
    %v844 = vunpack.c.l.b16 %v174
    %v845 = vunpack.c.h.b16 %v174
    %v846 = vunpack.c.l.b16 %v175
    %v847 = vunpack.c.h.b16 %v175
    %v848 = vunpack.c.l.b16 %v176
    %v849 = vunpack.c.h.b16 %v176
    %v850 = vunpack.c.l.b16 %v177
    %v851 = vunpack.c.h.b16 %v177
    %v852 = vunpack.c.l.b16 %v178
    %v853 = vunpack.c.h.b16 %v178
    %v854 = vunpack.c.l.b16 %v179
    %v855 = vunpack.c.h.b16 %v179
    %v856 = vunpack.c.l.b16 %v180
    %v857 = vunpack.c.h.b16 %v180
    %v858 = vunpack.c.l.b16 %v181
    %v859 = vunpack.c.h.b16 %v181
    %v860 = vunpack.c.l.b16 %v182
    %v861 = vunpack.c.h.b16 %v182
    %v862 = vunpack.c.l.b16 %v183
    %v863 = vunpack.c.h.b16 %v183
    %v864 = vunpack.c.l.b16 %v184
    %v865 = vunpack.c.h.b16 %v184
    %v866 = vunpack.c.l.b16 %v185
    %v867 = vunpack.c.h.b16 %v185
    %v868 = vunpack.c.l.b16 %v186
    %v869 = vunpack.c.h.b16 %v186
    %v870 = vunpack.c.l.b16 %v187
    %v871 = vunpack.c.h.b16 %v187
    %v872 = vunpack.c.l.b16 %v188
    %v873 = vunpack.c.h.b16 %v188
    %v874 = vunpack.c.l.b16 %v189
    %v875 = vunpack.c.h.b16 %v189
    %v876 = vunpack.c.l.b16 %v190
    %v877 = vunpack.c.h.b16 %v190
    %v878 = vunpack.c.l.b16 %v191
    %v879 = vunpack.c.h.b16 %v191
    %v880 = vunpack.c.l.b16 %v192
    %v881 = vunpack.c.h.b16 %v192
    %v882 = vunpack.c.l.b16 %v193
    %v883 = vunpack.c.h.b16 %v193
    %v884 = vunpack.c.l.b16 %v194
    %v885 = vunpack.c.h.b16 %v194
    %v886 = vunpack.c.l.b16 %v195
    %v887 = vunpack.c.h.b16 %v195
    %v888 = vunpack.c.l.b16 %v196
    %v889 = vunpack.c.h.b16 %v196
    %v890 = vunpack.c.l.b16 %v197
    %v891 = vunpack.c.h.b16 %v197
    %v892 = vunpack.c.l.b16 %v198
    %v893 = vunpack.c.h.b16 %v198
    %v894 = vunpack.c.l.b16 %v199
    %v895 = vunpack.c.h.b16 %v199
    %v896 = vunpack.c.l.b16 %v200
    %v897 = vunpack.c.h.b16 %v200
    %v898 = vunpack.c.l.b16 %v201
    %v899 = vunpack.c.h.b16 %v201
    %v900 = vunpack.c.l.b16 %v202
    %v901 = vunpack.c.h.b16 %v202
    %v902 = vunpack.c.l.b16 %v203
    %v903 = vunpack.c.h.b16 %v203
    %v904 = vunpack.c.l.b16 %v204
    %v905 = vunpack.c.h.b16 %v204
    %v906 = vunpack.c.l.b16 %v205
    %v907 = vunpack.c.h.b16 %v205
    %v908 = vunpack.c.l.b16 %v206
    %v909 = vunpack.c.h.b16 %v206
    %v910 = vunpack.c.l.b16 %v207
    %v911 = vunpack.c.h.b16 %v207
    %v912 = vunpack.c.l.b16 %v208
    %v913 = vunpack.c.h.b16 %v208
    %v914 = vunpack.c.l.b16 %v209
    %v915 = vunpack.c.h.b16 %v209
    %v916 = vunpack.c.l.b16 %v210
    %v917 = vunpack.c.h.b16 %v210
    %v918 = vunpack.c.l.b16 %v211
    %v919 = vunpack.c.h.b16 %v211
    %v920 = vunpack.c.l.b16 %v212
    %v921 = vunpack.c.h.b16 %v212
    %v922 = vunpack.c.l.b16 %v213
    %v923 = vunpack.c.h.b16 %v213
    %v924 = vunpack.c.l.b16 %v214
    %v925 = vunpack.c.h.b16 %v214
    %v926 = vunpack.c.l.b16 %v215
    %v927 = vunpack.c.h.b16 %v215
    %v928 = vunpack.c.l.b16 %v216
    %v929 = vunpack.c.h.b16 %v216
    %v930 = vunpack.c.l.b16 %v217
    %v931 = vunpack.c.h.b16 %v217
    %v932 = vunpack.c.l.b16 %v218
    %v933 = vunpack.c.h.b16 %v218
    %v934 = vunpack.c.l.b16 %v219
    %v935 = vunpack.c.h.b16 %v219
    %v936 = vunpack.c.l.b16 %v220
    %v937 = vunpack.c.h.b16 %v220
    %v938 = vunpack.c.l.b16 %v221
    %v939 = vunpack.c.h.b16 %v221
    %v940 = vunpack.c.l.b16 %v222
    %v941 = vunpack.c.h.b16 %v222
    %v942 = vunpack.c.l.b16 %v223
    %v943 = vunpack.c.h.b16 %v223
    %v944 = vunpack.c.l.b16 %v224
    %v945 = vunpack.c.h.b16 %v224
    %v946 = vunpack.c.l.b16 %v225
    %v947 = vunpack.c.h.b16 %v225
    %v948 = vunpack.c.l.b16 %v226
    %v949 = vunpack.c.h.b16 %v226
    %v950 = vunpack.c.l.b16 %v227
    %v951 = vunpack.c.h.b16 %v227
    %v952 = vunpack.c.l.b16 %v228
    %v953 = vunpack.c.h.b16 %v228
    %v954 = vunpack.c.l.b16 %v229
    %v955 = vunpack.c.h.b16 %v229
    %v956 = vunpack.c.l.b16 %v230
    %v957 = vunpack.c.h.b16 %v230
    %v958 = vunpack.c.l.b16 %v231
    %v959 = vunpack.c.h.b16 %v231
    %v960 = vunpack.c.l.b16 %v232
    %v961 = vunpack.c.h.b16 %v232
    %v962 = vunpack.c.l.b16 %v233
    %v963 = vunpack.c.h.b16 %v233
    %v964 = vunpack.c.l.b16 %v234
    %v965 = vunpack.c.h.b16 %v234
    %v966 = vunpack.c.l.b16 %v235
    %v967 = vunpack.c.h.b16 %v235
    %v968 = vunpack.c.l.b16 %v236
    %v969 = vunpack.c.h.b16 %v236
    %v970 = vunpack.c.l.b16 %v237
    %v971 = vunpack.c.h.b16 %v237
    %v972 = vunpack.c.l.b16 %v238
    %v973 = vunpack.c.h.b16 %v238
    %v974 = vunpack.c.l.b16 %v239
    %v975 = vunpack.c.h.b16 %v239
    %v976 = vunpack.c.l.b16 %v240
    %v977 = vunpack.c.h.b16 %v240
    %v978 = vunpack.c.l.b16 %v241
    %v979 = vunpack.c.h.b16 %v241
    %v980 = vunpack.c.l.b16 %v242
    %v981 = vunpack.c.h.b16 %v242
    %v982 = vunpack.c.l.b16 %v243
    %v983 = vunpack.c.h.b16 %v243
    %v984 = vunpack.c.l.b16 %v244
    %v985 = vunpack.c.h.b16 %v244
    %v986 = vunpack.c.l.b16 %v245
    %v987 = vunpack.c.h.b16 %v245
    %v988 = vunpack.c.l.b16 %v246
    %v989 = vunpack.c.h.b16 %v246
    %v990 = vunpack.c.l.b16 %v247
    %v991 = vunpack.c.h.b16 %v247
    %v992 = vunpack.c.l.b16 %v248
    %v993 = vunpack.c.h.b16 %v248
    %v994 = vunpack.c.l.b16 %v249
    %v995 = vunpack.c.h.b16 %v249
    %v996 = vunpack.c.l.b16 %v250
    %v997 = vunpack.c.h.b16 %v250
    %v998 = vunpack.c.l.b16 %v251
    %v999 = vunpack.c.h.b16 %v251
    %v1000 = vunpack.c.l.b16 %v252
    %v1001 = vunpack.c.h.b16 %v252
    %v1002 = vunpack.c.l.b16 %v253
    %v1003 = vunpack.c.h.b16 %v253
    %v1004 = vunpack.c.l.b16 %v254
    %v1005 = vunpack.c.h.b16 %v254
    %v1006 = vunpack.c.l.b16 %v255
    %v1007 = vunpack.c.h.b16 %v255
    %v1008 = vunpack.c.l.b16 %v256
    %v1009 = vunpack.c.h.b16 %v256
    %v1010 = vunpack.c.l.b16 %v257
    %v1011 = vunpack.c.h.b16 %v257
    %v1012 = vunpack.c.l.b16 %v258
    %v1013 = vunpack.c.h.b16 %v258
    %v1014 = vunpack.c.l.b16 %v259
    %v1015 = vunpack.c.h.b16 %v259
    %v1016 = vunpack.c.l.b16 %v260
    %v1017 = vunpack.c.h.b16 %v260
    %v1018 = vunpack.c.l.b16 %v261
    %v1019 = vunpack.c.h.b16 %v261
    %v1020 = vunpack.c.l.b16 %v262
    %v1021 = vunpack.c.h.b16 %v262
    %v1022 = vunpack.c.l.b16 %v263
    %v1023 = vunpack.c.h.b16 %v263
    %v1024 = vunpack.c.l.b16 %v264
    %v1025 = vunpack.c.h.b16 %v264
    %v1026 = vunpack.c.l.b16 %v265
    %v1027 = vunpack.c.h.b16 %v265
    %v1028 = vunpack.c.l.b16 %v266
    %v1029 = vunpack.c.h.b16 %v266
    %v1030 = vunpack.c.l.b16 %v267
    %v1031 = vunpack.c.h.b16 %v267
    %v1032 = vunpack.c.l.b16 %v268
    %v1033 = vunpack.c.h.b16 %v268
    %v1034 = vunpack.c.l.b16 %v269
    %v1035 = vunpack.c.h.b16 %v269
    %v1036 = vunpack.c.l.b16 %v270
    %v1037 = vunpack.c.h.b16 %v270
    %v1038 = vunpack.c.l.b16 %v271
    %v1039 = vunpack.c.h.b16 %v271
    %v1040 = vunpack.c.l.b16 %v272
    %v1041 = vunpack.c.h.b16 %v272
    %v1042 = vunpack.c.l.b16 %v273
    %v1043 = vunpack.c.h.b16 %v273
    %v1044 = vunpack.c.l.b16 %v274
    %v1045 = vunpack.c.h.b16 %v274
    %v1046 = vunpack.c.l.b16 %v275
    %v1047 = vunpack.c.h.b16 %v275
    %v1048 = vunpack.c.l.b16 %v276
    %v1049 = vunpack.c.h.b16 %v276
    %v1050 = vunpack.c.l.b16 %v277
    %v1051 = vunpack.c.h.b16 %v277
    %v1052 = vunpack.c.l.b16 %v278
    %v1053 = vunpack.c.h.b16 %v278
    %v1054 = vunpack.c.l.b16 %v279
    %v1055 = vunpack.c.h.b16 %v279
    %v1056 = vunpack.c.l.b16 %v280
    %v1057 = vunpack.c.h.b16 %v280
    %v1058 = vunpack.c.l.b16 %v281
    %v1059 = vunpack.c.h.b16 %v281
    %v1060 = vunpack.c.l.b16 %v282
    %v1061 = vunpack.c.h.b16 %v282
    %v1062 = vunpack.c.l.b16 %v283
    %v1063 = vunpack.c.h.b16 %v283
    %v1064 = vunpack.c.l.b16 %v284
    %v1065 = vunpack.c.h.b16 %v284
    %v1066 = vunpack.c.l.b16 %v285
    %v1067 = vunpack.c.h.b16 %v285
    %v1068 = vunpack.c.l.b16 %v286
    %v1069 = vunpack.c.h.b16 %v286
    %v1070 = vunpack.c.l.b16 %v287
    %v1071 = vunpack.c.h.b16 %v287
    %v1072 = vunpack.c.l.b16 %v288
    %v1073 = vunpack.c.h.b16 %v288
    %v1074 = vunpack.c.l.b16 %v289
    %v1075 = vunpack.c.h.b16 %v289
    %v1076 = vunpack.c.l.b16 %v290
    %v1077 = vunpack.c.h.b16 %v290
    %v1078 = vunpack.c.l.b16 %v291
    %v1079 = vunpack.c.h.b16 %v291
    %v1080 = vunpack.c.l.b16 %v292
    %v1081 = vunpack.c.h.b16 %v292
    %v1082 = vunpack.c.l.b16 %v293
    %v1083 = vunpack.c.h.b16 %v293
    %v1084 = vunpack.c.l.b16 %v294
    %v1085 = vunpack.c.h.b16 %v294
    %v1086 = vunpack.c.l.b16 %v295
    %v1087 = vunpack.c.h.b16 %v295
    %v1088 = vunpack.c.l.b16 %v296
    %v1089 = vunpack.c.h.b16 %v296
    %v1090 = vunpack.c.l.b16 %v297
    %v1091 = vunpack.c.h.b16 %v297
    %v1092 = vunpack.c.l.b16 %v298
    %v1093 = vunpack.c.h.b16 %v298
    %v1094 = vunpack.c.l.b16 %v299
    %v1095 = vunpack.c.h.b16 %v299
    %v1096 = vunpack.c.l.b16 %v300
    %v1097 = vunpack.c.h.b16 %v300
    %v1098 = vunpack.c.l.b16 %v301
    %v1099 = vunpack.c.h.b16 %v301
    %v1100 = vunpack.c.l.b16 %v302
    %v1101 = vunpack.c.h.b16 %v302
    %v1102 = vunpack.c.l.b16 %v303
    %v1103 = vunpack.c.h.b16 %v303
    %v1104 = vunpack.c.l.b16 %v304
    %v1105 = vunpack.c.h.b16 %v304
    %v1106 = vunpack.c.l.b16 %v305
    %v1107 = vunpack.c.h.b16 %v305
    %v1108 = vunpack.c.l.b16 %v306
    %v1109 = vunpack.c.h.b16 %v306
    %v1110 = vunpack.c.l.b16 %v307
    %v1111 = vunpack.c.h.b16 %v307
    %v1112 = vunpack.c.l.b16 %v308
    %v1113 = vunpack.c.h.b16 %v308
    %v1114 = vunpack.c.l.b16 %v309
    %v1115 = vunpack.c.h.b16 %v309
    %v1116 = vunpack.c.l.b16 %v310
    %v1117 = vunpack.c.h.b16 %v310
    %v1118 = vunpack.c.l.b16 %v311
    %v1119 = vunpack.c.h.b16 %v311
    %v1120 = vunpack.c.l.b16 %v312
    %v1121 = vunpack.c.h.b16 %v312
    %v1122 = vunpack.c.l.b16 %v313
    %v1123 = vunpack.c.h.b16 %v313
    %v1124 = vunpack.c.l.b16 %v314
    %v1125 = vunpack.c.h.b16 %v314
    %v1126 = vunpack.c.l.b16 %v315
    %v1127 = vunpack.c.h.b16 %v315
    %v1128 = vunpack.c.l.b16 %v316
    %v1129 = vunpack.c.h.b16 %v316
    %v1130 = vunpack.c.l.b16 %v317
    %v1131 = vunpack.c.h.b16 %v317
    %v1132 = vunpack.c.l.b16 %v318
    %v1133 = vunpack.c.h.b16 %v318
    %v1134 = vunpack.c.l.b16 %v319
    %v1135 = vunpack.c.h.b16 %v319
    %v1136 = vunpack.c.l.b16 %v320
    %v1137 = vunpack.c.h.b16 %v320
    %v1138 = vunpack.c.l.b16 %v321
    %v1139 = vunpack.c.h.b16 %v321
    %v1140 = vpack.c.b16 %v632, %v628
    %v1141 = vpack.c.b16 %v633, %v629
    %v1142 = vpack.c.b16 %v634, %v630
    %v1143 = vpack.c.b16 %v635, %v631
    %v1144 = vpack.c.b16 %v640, %v636
    %v1145 = vpack.c.b16 %v641, %v637
    %v1146 = vpack.c.b16 %v642, %v638
    %v1147 = vpack.c.b16 %v643, %v639
    %v1148 = vpack.c.b16 %v648, %v644
    %v1149 = vpack.c.b16 %v649, %v645
    %v1150 = vpack.c.b16 %v650, %v646
    %v1151 = vpack.c.b16 %v651, %v647
    %v1152 = vpack.c.b16 %v656, %v652
    %v1153 = vpack.c.b16 %v657, %v653
    %v1154 = vpack.c.b16 %v658, %v654
    %v1155 = vpack.c.b16 %v659, %v655
    %v1156 = vpack.c.b16 %v664, %v660
    %v1157 = vpack.c.b16 %v665, %v661
    %v1158 = vpack.c.b16 %v666, %v662
    %v1159 = vpack.c.b16 %v667, %v663
    %v1160 = vpack.c.b16 %v672, %v668
    %v1161 = vpack.c.b16 %v673, %v669
    %v1162 = vpack.c.b16 %v674, %v670
    %v1163 = vpack.c.b16 %v675, %v671
    %v1164 = vpack.c.b16 %v680, %v676
    %v1165 = vpack.c.b16 %v681, %v677
    %v1166 = vpack.c.b16 %v682, %v678
    %v1167 = vpack.c.b16 %v683, %v679
    %v1168 = vpack.c.b16 %v688, %v684
    %v1169 = vpack.c.b16 %v689, %v685
    %v1170 = vpack.c.b16 %v690, %v686
    %v1171 = vpack.c.b16 %v691, %v687
    %v1172 = vpack.c.b16 %v696, %v692
    %v1173 = vpack.c.b16 %v697, %v693
    %v1174 = vpack.c.b16 %v698, %v694
    %v1175 = vpack.c.b16 %v699, %v695
    %v1176 = vpack.c.b16 %v704, %v700
    %v1177 = vpack.c.b16 %v705, %v701
    %v1178 = vpack.c.b16 %v706, %v702
    %v1179 = vpack.c.b16 %v707, %v703
    %v1180 = vpack.c.b16 %v712, %v708
    %v1181 = vpack.c.b16 %v713, %v709
    %v1182 = vpack.c.b16 %v714, %v710
    %v1183 = vpack.c.b16 %v715, %v711
    %v1184 = vpack.c.b16 %v720, %v716
    %v1185 = vpack.c.b16 %v721, %v717
    %v1186 = vpack.c.b16 %v722, %v718
    %v1187 = vpack.c.b16 %v723, %v719
    %v1188 = vpack.c.b16 %v728, %v724
    %v1189 = vpack.c.b16 %v729, %v725
    %v1190 = vpack.c.b16 %v730, %v726
    %v1191 = vpack.c.b16 %v731, %v727
    %v1192 = vpack.c.b16 %v736, %v732
    %v1193 = vpack.c.b16 %v737, %v733
    %v1194 = vpack.c.b16 %v738, %v734
    %v1195 = vpack.c.b16 %v739, %v735
    %v1196 = vpack.c.b16 %v744, %v740
    %v1197 = vpack.c.b16 %v745, %v741
    %v1198 = vpack.c.b16 %v746, %v742
    %v1199 = vpack.c.b16 %v747, %v743
    %v1200 = vpack.c.b16 %v752, %v748
    %v1201 = vpack.c.b16 %v753, %v749
    %v1202 = vpack.c.b16 %v754, %v750
    %v1203 = vpack.c.b16 %v755, %v751
    %v1204 = vpack.c.b16 %v760, %v756
    %v1205 = vpack.c.b16 %v761, %v757
    %v1206 = vpack.c.b16 %v762, %v758
    %v1207 = vpack.c.b16 %v763, %v759
    %v1208 = vpack.c.b16 %v768, %v764
    %v1209 = vpack.c.b16 %v769, %v765
    %v1210 = vpack.c.b16 %v770, %v766
    %v1211 = vpack.c.b16 %v771, %v767
    %v1212 = vpack.c.b16 %v776, %v772
    %v1213 = vpack.c.b16 %v777, %v773
    %v1214 = vpack.c.b16 %v778, %v774
    %v1215 = vpack.c.b16 %v779, %v775
    %v1216 = vpack.c.b16 %v784, %v780
    %v1217 = vpack.c.b16 %v785, %v781
    %v1218 = vpack.c.b16 %v786, %v782
    %v1219 = vpack.c.b16 %v787, %v783
    %v1220 = vpack.c.b16 %v792, %v788
    %v1221 = vpack.c.b16 %v793, %v789
    %v1222 = vpack.c.b16 %v794, %v790
    %v1223 = vpack.c.b16 %v795, %v791
    %v1224 = vpack.c.b16 %v800, %v796
    %v1225 = vpack.c.b16 %v801, %v797
    %v1226 = vpack.c.b16 %v802, %v798
    %v1227 = vpack.c.b16 %v803, %v799
    %v1228 = vpack.c.b16 %v808, %v804
    %v1229 = vpack.c.b16 %v809, %v805
    %v1230 = vpack.c.b16 %v810, %v806
    %v1231 = vpack.c.b16 %v811, %v807
    %v1232 = vpack.c.b16 %v816, %v812
    %v1233 = vpack.c.b16 %v817, %v813
    %v1234 = vpack.c.b16 %v818, %v814
    %v1235 = vpack.c.b16 %v819, %v815
    %v1236 = vpack.c.b16 %v824, %v820
    %v1237 = vpack.c.b16 %v825, %v821
    %v1238 = vpack.c.b16 %v826, %v822
    %v1239 = vpack.c.b16 %v827, %v823
    %v1240 = vpack.c.b16 %v832, %v828
    %v1241 = vpack.c.b16 %v833, %v829
    %v1242 = vpack.c.b16 %v834, %v830
    %v1243 = vpack.c.b16 %v835, %v831
    %v1244 = vpack.c.b16 %v840, %v836
    %v1245 = vpack.c.b16 %v841, %v837
    %v1246 = vpack.c.b16 %v842, %v838
    %v1247 = vpack.c.b16 %v843, %v839
    %v1248 = vpack.c.b16 %v848, %v844
    %v1249 = vpack.c.b16 %v849, %v845
    %v1250 = vpack.c.b16 %v850, %v846
    %v1251 = vpack.c.b16 %v851, %v847
    %v1252 = vpack.c.b16 %v856, %v852
    %v1253 = vpack.c.b16 %v857, %v853
    %v1254 = vpack.c.b16 %v858, %v854
    %v1255 = vpack.c.b16 %v859, %v855
    %v1256 = vpack.c.b16 %v864, %v860
    %v1257 = vpack.c.b16 %v865, %v861
    %v1258 = vpack.c.b16 %v866, %v862
    %v1259 = vpack.c.b16 %v867, %v863
    %v1260 = vpack.c.b16 %v872, %v868
    %v1261 = vpack.c.b16 %v873, %v869
    %v1262 = vpack.c.b16 %v874, %v870
    %v1263 = vpack.c.b16 %v875, %v871
    %v1264 = vpack.c.b16 %v880, %v876
    %v1265 = vpack.c.b16 %v881, %v877
    %v1266 = vpack.c.b16 %v882, %v878
    %v1267 = vpack.c.b16 %v883, %v879
    %v1268 = vpack.c.b16 %v888, %v884
    %v1269 = vpack.c.b16 %v889, %v885
    %v1270 = vpack.c.b16 %v890, %v886
    %v1271 = vpack.c.b16 %v891, %v887
    %v1272 = vpack.c.b16 %v896, %v892
    %v1273 = vpack.c.b16 %v897, %v893
    %v1274 = vpack.c.b16 %v898, %v894
    %v1275 = vpack.c.b16 %v899, %v895
    %v1276 = vpack.c.b16 %v904, %v900
    %v1277 = vpack.c.b16 %v905, %v901
    %v1278 = vpack.c.b16 %v906, %v902
    %v1279 = vpack.c.b16 %v907, %v903
    %v1280 = vpack.c.b16 %v912, %v908
    %v1281 = vpack.c.b16 %v913, %v909
    %v1282 = vpack.c.b16 %v914, %v910
    %v1283 = vpack.c.b16 %v915, %v911
    %v1284 = vpack.c.b16 %v920, %v916
    %v1285 = vpack.c.b16 %v921, %v917
    %v1286 = vpack.c.b16 %v922, %v918
    %v1287 = vpack.c.b16 %v923, %v919
    %v1288 = vpack.c.b16 %v928, %v924
    %v1289 = vpack.c.b16 %v929, %v925
    %v1290 = vpack.c.b16 %v930, %v926
    %v1291 = vpack.c.b16 %v931, %v927
    %v1292 = vpack.c.b16 %v936, %v932
    %v1293 = vpack.c.b16 %v937, %v933
    %v1294 = vpack.c.b16 %v938, %v934
    %v1295 = vpack.c.b16 %v939, %v935
    %v1296 = vpack.c.b16 %v944, %v940
    %v1297 = vpack.c.b16 %v945, %v941
    %v1298 = vpack.c.b16 %v946, %v942
    %v1299 = vpack.c.b16 %v947, %v943
    %v1300 = vpack.c.b16 %v952, %v948
    %v1301 = vpack.c.b16 %v953, %v949
    %v1302 = vpack.c.b16 %v954, %v950
    %v1303 = vpack.c.b16 %v955, %v951
    %v1304 = vpack.c.b16 %v960, %v956
    %v1305 = vpack.c.b16 %v961, %v957
    %v1306 = vpack.c.b16 %v962, %v958
    %v1307 = vpack.c.b16 %v963, %v959
    %v1308 = vpack.c.b16 %v968, %v964
    %v1309 = vpack.c.b16 %v969, %v965
    %v1310 = vpack.c.b16 %v970, %v966
    %v1311 = vpack.c.b16 %v971, %v967
    %v1312 = vpack.c.b16 %v976, %v972
    %v1313 = vpack.c.b16 %v977, %v973
    %v1314 = vpack.c.b16 %v978, %v974
    %v1315 = vpack.c.b16 %v979, %v975
    %v1316 = vpack.c.b16 %v984, %v980
    %v1317 = vpack.c.b16 %v985, %v981
    %v1318 = vpack.c.b16 %v986, %v982
    %v1319 = vpack.c.b16 %v987, %v983
    %v1320 = vpack.c.b16 %v992, %v988
    %v1321 = vpack.c.b16 %v993, %v989
    %v1322 = vpack.c.b16 %v994, %v990
    %v1323 = vpack.c.b16 %v995, %v991
    %v1324 = vpack.c.b16 %v1000, %v996
    %v1325 = vpack.c.b16 %v1001, %v997
    %v1326 = vpack.c.b16 %v1002, %v998
    %v1327 = vpack.c.b16 %v1003, %v999
    %v1328 = vpack.c.b16 %v1008, %v1004
    %v1329 = vpack.c.b16 %v1009, %v1005
    %v1330 = vpack.c.b16 %v1010, %v1006
    %v1331 = vpack.c.b16 %v1011, %v1007
    %v1332 = vpack.c.b16 %v1016, %v1012
    %v1333 = vpack.c.b16 %v1017, %v1013
    %v1334 = vpack.c.b16 %v1018, %v1014
    %v1335 = vpack.c.b16 %v1019, %v1015
    %v1336 = vpack.c.b16 %v1024, %v1020
    %v1337 = vpack.c.b16 %v1025, %v1021
    %v1338 = vpack.c.b16 %v1026, %v1022
    %v1339 = vpack.c.b16 %v1027, %v1023
    %v1340 = vpack.c.b16 %v1032, %v1028
    %v1341 = vpack.c.b16 %v1033, %v1029
    %v1342 = vpack.c.b16 %v1034, %v1030
    %v1343 = vpack.c.b16 %v1035, %v1031
    %v1344 = vpack.c.b16 %v1040, %v1036
    %v1345 = vpack.c.b16 %v1041, %v1037
    %v1346 = vpack.c.b16 %v1042, %v1038
    %v1347 = vpack.c.b16 %v1043, %v1039
    %v1348 = vpack.c.b16 %v1048, %v1044
    %v1349 = vpack.c.b16 %v1049, %v1045
    %v1350 = vpack.c.b16 %v1050, %v1046
    %v1351 = vpack.c.b16 %v1051, %v1047
    %v1352 = vpack.c.b16 %v1056, %v1052
    %v1353 = vpack.c.b16 %v1057, %v1053
    %v1354 = vpack.c.b16 %v1058, %v1054
    %v1355 = vpack.c.b16 %v1059, %v1055
    %v1356 = vpack.c.b16 %v1064, %v1060
    %v1357 = vpack.c.b16 %v1065, %v1061
    %v1358 = vpack.c.b16 %v1066, %v1062
    %v1359 = vpack.c.b16 %v1067, %v1063
    %v1360 = vpack.c.b16 %v1072, %v1068
    %v1361 = vpack.c.b16 %v1073, %v1069
    %v1362 = vpack.c.b16 %v1074, %v1070
    %v1363 = vpack.c.b16 %v1075, %v1071
    %v1364 = vpack.c.b16 %v1080, %v1076
    %v1365 = vpack.c.b16 %v1081, %v1077
    %v1366 = vpack.c.b16 %v1082, %v1078
    %v1367 = vpack.c.b16 %v1083, %v1079
    %v1368 = vpack.c.b16 %v1088, %v1084
    %v1369 = vpack.c.b16 %v1089, %v1085
    %v1370 = vpack.c.b16 %v1090, %v1086
    %v1371 = vpack.c.b16 %v1091, %v1087
    %v1372 = vpack.c.b16 %v1096, %v1092
    %v1373 = vpack.c.b16 %v1097, %v1093
    %v1374 = vpack.c.b16 %v1098, %v1094
    %v1375 = vpack.c.b16 %v1099, %v1095
    %v1376 = vpack.c.b16 %v1104, %v1100
    %v1377 = vpack.c.b16 %v1105, %v1101
    %v1378 = vpack.c.b16 %v1106, %v1102
    %v1379 = vpack.c.b16 %v1107, %v1103
    %v1380 = vpack.c.b16 %v1112, %v1108
    %v1381 = vpack.c.b16 %v1113, %v1109
    %v1382 = vpack.c.b16 %v1114, %v1110
    %v1383 = vpack.c.b16 %v1115, %v1111
    %v1384 = vpack.c.b16 %v1120, %v1116
    %v1385 = vpack.c.b16 %v1121, %v1117
    %v1386 = vpack.c.b16 %v1122, %v1118
    %v1387 = vpack.c.b16 %v1123, %v1119
    %v1388 = vpack.c.b16 %v1128, %v1124
    %v1389 = vpack.c.b16 %v1129, %v1125
    %v1390 = vpack.c.b16 %v1130, %v1126
    %v1391 = vpack.c.b16 %v1131, %v1127
    %v1392 = vpack.c.b16 %v1136, %v1132
    %v1393 = vpack.c.b16 %v1137, %v1133
    %v1394 = vpack.c.b16 %v1138, %v1134
    %v1395 = vpack.c.b16 %v1139, %v1135
    %1652 = vmatpush.bf16.msra.mxu0 %v1168
    %1653 = vmatpush.bf16.msra.mxu0 %v1164
    %1654 = vmatpush.bf16.msra.mxu0 %v1160
    %1655 = vmatpush.bf16.msra.mxu0 %v1156
    %1656 = vmatpush.bf16.msra.mxu0 %v1152
    %1657 = vmatpush.bf16.msra.mxu0 %v1148
    %1658 = vmatpush.bf16.msra.mxu0 %v1144
    %1659 = vmatpush.bf16.msra.mxu0 %v1140
    %1660 = vmatmul.bf16.gmra.mxu0 %v356
    %v1661 = vpop.f32.mrf.mxu0
    %v1662 = vadd.f32 %v324, %v1661
    %v1663 = vpop.f32.mrf.mxu0
    %v1664 = vadd.f32 %v324, %v1663
    %1665 = vdwg.mxu0
    %1666 = vmatpush.bf16.msra.mxu0 %v1200
    %1667 = vmatpush.bf16.msra.mxu0 %v1196
    %1668 = vmatpush.bf16.msra.mxu0 %v1192
    %1669 = vmatpush.bf16.msra.mxu0 %v1188
    %1670 = vmatpush.bf16.msra.mxu0 %v1184
    %1671 = vmatpush.bf16.msra.mxu0 %v1180
    %1672 = vmatpush.bf16.msra.mxu0 %v1176
    %1673 = vmatpush.bf16.msra.mxu0 %v1172
    %1674 = vmatmul.bf16.gmra.mxu0 %v357
    %v1675 = vpop.f32.mrf.mxu0
    %v1676 = vadd.f32 %v1662, %v1675
    %v1677 = vpop.f32.mrf.mxu0
    %v1678 = vadd.f32 %v1664, %v1677
    %1679 = vdwg.mxu0
    %1680 = vmatpush.bf16.msra.mxu0 %v1232
    %1681 = vmatpush.bf16.msra.mxu0 %v1228
    %1682 = vmatpush.bf16.msra.mxu0 %v1224
    %1683 = vmatpush.bf16.msra.mxu0 %v1220
    %1684 = vmatpush.bf16.msra.mxu0 %v1216
    %1685 = vmatpush.bf16.msra.mxu0 %v1212
    %1686 = vmatpush.bf16.msra.mxu0 %v1208
    %1687 = vmatpush.bf16.msra.mxu0 %v1204
    %1688 = vmatmul.bf16.gmra.mxu0 %v358
    %v1689 = vpop.f32.mrf.mxu0
    %v1690 = vadd.f32 %v1676, %v1689
    %v1691 = vpop.f32.mrf.mxu0
    %v1692 = vadd.f32 %v1678, %v1691
    %1693 = vdwg.mxu0
    %1694 = vmatpush.bf16.msra.mxu0 %v1264
    %1695 = vmatpush.bf16.msra.mxu0 %v1260
    %1696 = vmatpush.bf16.msra.mxu0 %v1256
    %1697 = vmatpush.bf16.msra.mxu0 %v1252
    %1698 = vmatpush.bf16.msra.mxu0 %v1248
    %1699 = vmatpush.bf16.msra.mxu0 %v1244
    %1700 = vmatpush.bf16.msra.mxu0 %v1240
    %1701 = vmatpush.bf16.msra.mxu0 %v1236
    %1702 = vmatmul.bf16.gmra.mxu0 %v359
    %v1703 = vpop.f32.mrf.mxu0
    %v1704 = vadd.f32 %v1690, %v1703
    %v1705 = vpop.f32.mrf.mxu0
    %v1706 = vadd.f32 %v1692, %v1705
    %1707 = vdwg.mxu0
    %1708 = vmatpush.bf16.msra.mxu0 %v1296
    %1709 = vmatpush.bf16.msra.mxu0 %v1292
    %1710 = vmatpush.bf16.msra.mxu0 %v1288
    %1711 = vmatpush.bf16.msra.mxu0 %v1284
    %1712 = vmatpush.bf16.msra.mxu0 %v1280
    %1713 = vmatpush.bf16.msra.mxu0 %v1276
    %1714 = vmatpush.bf16.msra.mxu0 %v1272
    %1715 = vmatpush.bf16.msra.mxu0 %v1268
    %1716 = vmatmul.bf16.gmra.mxu0 %v360
    %v1717 = vpop.f32.mrf.mxu0
    %v1718 = vadd.f32 %v1704, %v1717
    %v1719 = vpop.f32.mrf.mxu0
    %v1720 = vadd.f32 %v1706, %v1719
    %1721 = vdwg.mxu0
    %1722 = vmatpush.bf16.msra.mxu0 %v1328
    %1723 = vmatpush.bf16.msra.mxu0 %v1324
    %1724 = vmatpush.bf16.msra.mxu0 %v1320
    %1725 = vmatpush.bf16.msra.mxu0 %v1316
    %1726 = vmatpush.bf16.msra.mxu0 %v1312
    %1727 = vmatpush.bf16.msra.mxu0 %v1308
    %1728 = vmatpush.bf16.msra.mxu0 %v1304
    %1729 = vmatpush.bf16.msra.mxu0 %v1300
    %1730 = vmatmul.bf16.gmra.mxu0 %v361
    %v1731 = vpop.f32.mrf.mxu0
    %v1732 = vadd.f32 %v1718, %v1731
    %v1733 = vpop.f32.mrf.mxu0
    %v1734 = vadd.f32 %v1720, %v1733
    %1735 = vdwg.mxu0
    %1736 = vmatpush.bf16.msra.mxu0 %v1360
    %1737 = vmatpush.bf16.msra.mxu0 %v1356
    %1738 = vmatpush.bf16.msra.mxu0 %v1352
    %1739 = vmatpush.bf16.msra.mxu0 %v1348
    %1740 = vmatpush.bf16.msra.mxu0 %v1344
    %1741 = vmatpush.bf16.msra.mxu0 %v1340
    %1742 = vmatpush.bf16.msra.mxu0 %v1336
    %1743 = vmatpush.bf16.msra.mxu0 %v1332
    %1744 = vmatmul.bf16.gmra.mxu0 %v362
    %v1745 = vpop.f32.mrf.mxu0
    %v1746 = vadd.f32 %v1732, %v1745
    %v1747 = vpop.f32.mrf.mxu0
    %v1748 = vadd.f32 %v1734, %v1747
    %1749 = vdwg.mxu0
    %1750 = vmatpush.bf16.msra.mxu0 %v1392
    %1751 = vmatpush.bf16.msra.mxu0 %v1388
    %1752 = vmatpush.bf16.msra.mxu0 %v1384
    %1753 = vmatpush.bf16.msra.mxu0 %v1380
    %1754 = vmatpush.bf16.msra.mxu0 %v1376
    %1755 = vmatpush.bf16.msra.mxu0 %v1372
    %1756 = vmatpush.bf16.msra.mxu0 %v1368
    %1757 = vmatpush.bf16.msra.mxu0 %v1364
    %1758 = vmatmul.bf16.gmra.mxu0 %v363
    %v1759 = vpop.f32.mrf.mxu0
    %v1760 = vadd.f32 %v1746, %v1759
    %v1761 = vpop.f32.mrf.mxu0
    %v1762 = vadd.f32 %v1748, %v1761
    %1763 = vdwg.mxu0
    %1764 = vmatpush.bf16.msra.mxu0 %v1169
    %1765 = vmatpush.bf16.msra.mxu0 %v1165
    %1766 = vmatpush.bf16.msra.mxu0 %v1161
    %1767 = vmatpush.bf16.msra.mxu0 %v1157
    %1768 = vmatpush.bf16.msra.mxu0 %v1153
    %1769 = vmatpush.bf16.msra.mxu0 %v1149
    %1770 = vmatpush.bf16.msra.mxu0 %v1145
    %1771 = vmatpush.bf16.msra.mxu0 %v1141
    %1772 = vmatmul.bf16.gmra.mxu0 %v356
    %v1773 = vpop.f32.mrf.mxu0
    %v1774 = vadd.f32 %v325, %v1773
    %v1775 = vpop.f32.mrf.mxu0
    %v1776 = vadd.f32 %v325, %v1775
    %1777 = vdwg.mxu0
    %1778 = vmatpush.bf16.msra.mxu0 %v1201
    %1779 = vmatpush.bf16.msra.mxu0 %v1197
    %1780 = vmatpush.bf16.msra.mxu0 %v1193
    %1781 = vmatpush.bf16.msra.mxu0 %v1189
    %1782 = vmatpush.bf16.msra.mxu0 %v1185
    %1783 = vmatpush.bf16.msra.mxu0 %v1181
    %1784 = vmatpush.bf16.msra.mxu0 %v1177
    %1785 = vmatpush.bf16.msra.mxu0 %v1173
    %1786 = vmatmul.bf16.gmra.mxu0 %v357
    %v1787 = vpop.f32.mrf.mxu0
    %v1788 = vadd.f32 %v1774, %v1787
    %v1789 = vpop.f32.mrf.mxu0
    %v1790 = vadd.f32 %v1776, %v1789
    %1791 = vdwg.mxu0
    %1792 = vmatpush.bf16.msra.mxu0 %v1233
    %1793 = vmatpush.bf16.msra.mxu0 %v1229
    %1794 = vmatpush.bf16.msra.mxu0 %v1225
    %1795 = vmatpush.bf16.msra.mxu0 %v1221
    %1796 = vmatpush.bf16.msra.mxu0 %v1217
    %1797 = vmatpush.bf16.msra.mxu0 %v1213
    %1798 = vmatpush.bf16.msra.mxu0 %v1209
    %1799 = vmatpush.bf16.msra.mxu0 %v1205
    %1800 = vmatmul.bf16.gmra.mxu0 %v358
    %v1801 = vpop.f32.mrf.mxu0
    %v1802 = vadd.f32 %v1788, %v1801
    %v1803 = vpop.f32.mrf.mxu0
    %v1804 = vadd.f32 %v1790, %v1803
    %1805 = vdwg.mxu0
    %1806 = vmatpush.bf16.msra.mxu0 %v1265
    %1807 = vmatpush.bf16.msra.mxu0 %v1261
    %1808 = vmatpush.bf16.msra.mxu0 %v1257
    %1809 = vmatpush.bf16.msra.mxu0 %v1253
    %1810 = vmatpush.bf16.msra.mxu0 %v1249
    %1811 = vmatpush.bf16.msra.mxu0 %v1245
    %1812 = vmatpush.bf16.msra.mxu0 %v1241
    %1813 = vmatpush.bf16.msra.mxu0 %v1237
    %1814 = vmatmul.bf16.gmra.mxu0 %v359
    %v1815 = vpop.f32.mrf.mxu0
    %v1816 = vadd.f32 %v1802, %v1815
    %v1817 = vpop.f32.mrf.mxu0
    %v1818 = vadd.f32 %v1804, %v1817
    %1819 = vdwg.mxu0
    %1820 = vmatpush.bf16.msra.mxu0 %v1297
    %1821 = vmatpush.bf16.msra.mxu0 %v1293
    %1822 = vmatpush.bf16.msra.mxu0 %v1289
    %1823 = vmatpush.bf16.msra.mxu0 %v1285
    %1824 = vmatpush.bf16.msra.mxu0 %v1281
    %1825 = vmatpush.bf16.msra.mxu0 %v1277
    %1826 = vmatpush.bf16.msra.mxu0 %v1273
    %1827 = vmatpush.bf16.msra.mxu0 %v1269
    %1828 = vmatmul.bf16.gmra.mxu0 %v360
    %v1829 = vpop.f32.mrf.mxu0
    %v1830 = vadd.f32 %v1816, %v1829
    %v1831 = vpop.f32.mrf.mxu0
    %v1832 = vadd.f32 %v1818, %v1831
    %1833 = vdwg.mxu0
    %1834 = vmatpush.bf16.msra.mxu0 %v1329
    %1835 = vmatpush.bf16.msra.mxu0 %v1325
    %1836 = vmatpush.bf16.msra.mxu0 %v1321
    %1837 = vmatpush.bf16.msra.mxu0 %v1317
    %1838 = vmatpush.bf16.msra.mxu0 %v1313
    %1839 = vmatpush.bf16.msra.mxu0 %v1309
    %1840 = vmatpush.bf16.msra.mxu0 %v1305
    %1841 = vmatpush.bf16.msra.mxu0 %v1301
    %1842 = vmatmul.bf16.gmra.mxu0 %v361
    %v1843 = vpop.f32.mrf.mxu0
    %v1844 = vadd.f32 %v1830, %v1843
    %v1845 = vpop.f32.mrf.mxu0
    %v1846 = vadd.f32 %v1832, %v1845
    %1847 = vdwg.mxu0
    %1848 = vmatpush.bf16.msra.mxu0 %v1361
    %1849 = vmatpush.bf16.msra.mxu0 %v1357
    %1850 = vmatpush.bf16.msra.mxu0 %v1353
    %1851 = vmatpush.bf16.msra.mxu0 %v1349
    %1852 = vmatpush.bf16.msra.mxu0 %v1345
    %1853 = vmatpush.bf16.msra.mxu0 %v1341
    %1854 = vmatpush.bf16.msra.mxu0 %v1337
    %1855 = vmatpush.bf16.msra.mxu0 %v1333
    %1856 = vmatmul.bf16.gmra.mxu0 %v362
    %v1857 = vpop.f32.mrf.mxu0
    %v1858 = vadd.f32 %v1844, %v1857
    %v1859 = vpop.f32.mrf.mxu0
    %v1860 = vadd.f32 %v1846, %v1859
    %1861 = vdwg.mxu0
    %1862 = vmatpush.bf16.msra.mxu0 %v1393
    %1863 = vmatpush.bf16.msra.mxu0 %v1389
    %1864 = vmatpush.bf16.msra.mxu0 %v1385
    %1865 = vmatpush.bf16.msra.mxu0 %v1381
    %1866 = vmatpush.bf16.msra.mxu0 %v1377
    %1867 = vmatpush.bf16.msra.mxu0 %v1373
    %1868 = vmatpush.bf16.msra.mxu0 %v1369
    %1869 = vmatpush.bf16.msra.mxu0 %v1365
    %1870 = vmatmul.bf16.gmra.mxu0 %v363
    %v1871 = vpop.f32.mrf.mxu0
    %v1872 = vadd.f32 %v1858, %v1871
    %v1873 = vpop.f32.mrf.mxu0
    %v1874 = vadd.f32 %v1860, %v1873
    %1875 = vdwg.mxu0
    %1876 = vmatpush.bf16.msra.mxu0 %v1170
    %1877 = vmatpush.bf16.msra.mxu0 %v1166
    %1878 = vmatpush.bf16.msra.mxu0 %v1162
    %1879 = vmatpush.bf16.msra.mxu0 %v1158
    %1880 = vmatpush.bf16.msra.mxu0 %v1154
    %1881 = vmatpush.bf16.msra.mxu0 %v1150
    %1882 = vmatpush.bf16.msra.mxu0 %v1146
    %1883 = vmatpush.bf16.msra.mxu0 %v1142
    %1884 = vmatmul.bf16.gmra.mxu0 %v356
    %v1885 = vpop.f32.mrf.mxu0
    %v1886 = vadd.f32 %v326, %v1885
    %v1887 = vpop.f32.mrf.mxu0
    %v1888 = vadd.f32 %v326, %v1887
    %1889 = vdwg.mxu0
    %1890 = vmatpush.bf16.msra.mxu0 %v1202
    %1891 = vmatpush.bf16.msra.mxu0 %v1198
    %1892 = vmatpush.bf16.msra.mxu0 %v1194
    %1893 = vmatpush.bf16.msra.mxu0 %v1190
    %1894 = vmatpush.bf16.msra.mxu0 %v1186
    %1895 = vmatpush.bf16.msra.mxu0 %v1182
    %1896 = vmatpush.bf16.msra.mxu0 %v1178
    %1897 = vmatpush.bf16.msra.mxu0 %v1174
    %1898 = vmatmul.bf16.gmra.mxu0 %v357
    %v1899 = vpop.f32.mrf.mxu0
    %v1900 = vadd.f32 %v1886, %v1899
    %v1901 = vpop.f32.mrf.mxu0
    %v1902 = vadd.f32 %v1888, %v1901
    %1903 = vdwg.mxu0
    %1904 = vmatpush.bf16.msra.mxu0 %v1234
    %1905 = vmatpush.bf16.msra.mxu0 %v1230
    %1906 = vmatpush.bf16.msra.mxu0 %v1226
    %1907 = vmatpush.bf16.msra.mxu0 %v1222
    %1908 = vmatpush.bf16.msra.mxu0 %v1218
    %1909 = vmatpush.bf16.msra.mxu0 %v1214
    %1910 = vmatpush.bf16.msra.mxu0 %v1210
    %1911 = vmatpush.bf16.msra.mxu0 %v1206
    %1912 = vmatmul.bf16.gmra.mxu0 %v358
    %v1913 = vpop.f32.mrf.mxu0
    %v1914 = vadd.f32 %v1900, %v1913
    %v1915 = vpop.f32.mrf.mxu0
    %v1916 = vadd.f32 %v1902, %v1915
    %1917 = vdwg.mxu0
    %1918 = vmatpush.bf16.msra.mxu0 %v1266
    %1919 = vmatpush.bf16.msra.mxu0 %v1262
    %1920 = vmatpush.bf16.msra.mxu0 %v1258
    %1921 = vmatpush.bf16.msra.mxu0 %v1254
    %1922 = vmatpush.bf16.msra.mxu0 %v1250
    %1923 = vmatpush.bf16.msra.mxu0 %v1246
    %1924 = vmatpush.bf16.msra.mxu0 %v1242
    %1925 = vmatpush.bf16.msra.mxu0 %v1238
    %1926 = vmatmul.bf16.gmra.mxu0 %v359
    %v1927 = vpop.f32.mrf.mxu0
    %v1928 = vadd.f32 %v1914, %v1927
    %v1929 = vpop.f32.mrf.mxu0
    %v1930 = vadd.f32 %v1916, %v1929
    %1931 = vdwg.mxu0
    %1932 = vmatpush.bf16.msra.mxu0 %v1298
    %1933 = vmatpush.bf16.msra.mxu0 %v1294
    %1934 = vmatpush.bf16.msra.mxu0 %v1290
    %1935 = vmatpush.bf16.msra.mxu0 %v1286
    %1936 = vmatpush.bf16.msra.mxu0 %v1282
    %1937 = vmatpush.bf16.msra.mxu0 %v1278
    %1938 = vmatpush.bf16.msra.mxu0 %v1274
    %1939 = vmatpush.bf16.msra.mxu0 %v1270
    %1940 = vmatmul.bf16.gmra.mxu0 %v360
    %v1941 = vpop.f32.mrf.mxu0
    %v1942 = vadd.f32 %v1928, %v1941
    %v1943 = vpop.f32.mrf.mxu0
    %v1944 = vadd.f32 %v1930, %v1943
    %1945 = vdwg.mxu0
    %1946 = vmatpush.bf16.msra.mxu0 %v1330
    %1947 = vmatpush.bf16.msra.mxu0 %v1326
    %1948 = vmatpush.bf16.msra.mxu0 %v1322
    %1949 = vmatpush.bf16.msra.mxu0 %v1318
    %1950 = vmatpush.bf16.msra.mxu0 %v1314
    %1951 = vmatpush.bf16.msra.mxu0 %v1310
    %1952 = vmatpush.bf16.msra.mxu0 %v1306
    %1953 = vmatpush.bf16.msra.mxu0 %v1302
    %1954 = vmatmul.bf16.gmra.mxu0 %v361
    %v1955 = vpop.f32.mrf.mxu0
    %v1956 = vadd.f32 %v1942, %v1955
    %v1957 = vpop.f32.mrf.mxu0
    %v1958 = vadd.f32 %v1944, %v1957
    %1959 = vdwg.mxu0
    %1960 = vmatpush.bf16.msra.mxu0 %v1362
    %1961 = vmatpush.bf16.msra.mxu0 %v1358
    %1962 = vmatpush.bf16.msra.mxu0 %v1354
    %1963 = vmatpush.bf16.msra.mxu0 %v1350
    %1964 = vmatpush.bf16.msra.mxu0 %v1346
    %1965 = vmatpush.bf16.msra.mxu0 %v1342
    %1966 = vmatpush.bf16.msra.mxu0 %v1338
    %1967 = vmatpush.bf16.msra.mxu0 %v1334
    %1968 = vmatmul.bf16.gmra.mxu0 %v362
    %v1969 = vpop.f32.mrf.mxu0
    %v1970 = vadd.f32 %v1956, %v1969
    %v1971 = vpop.f32.mrf.mxu0
    %v1972 = vadd.f32 %v1958, %v1971
    %1973 = vdwg.mxu0
    %1974 = vmatpush.bf16.msra.mxu0 %v1394
    %1975 = vmatpush.bf16.msra.mxu0 %v1390
    %1976 = vmatpush.bf16.msra.mxu0 %v1386
    %1977 = vmatpush.bf16.msra.mxu0 %v1382
    %1978 = vmatpush.bf16.msra.mxu0 %v1378
    %1979 = vmatpush.bf16.msra.mxu0 %v1374
    %1980 = vmatpush.bf16.msra.mxu0 %v1370
    %1981 = vmatpush.bf16.msra.mxu0 %v1366
    %1982 = vmatmul.bf16.gmra.mxu0 %v363
    %v1983 = vpop.f32.mrf.mxu0
    %v1984 = vadd.f32 %v1970, %v1983
    %v1985 = vpop.f32.mrf.mxu0
    %v1986 = vadd.f32 %v1972, %v1985
    %1987 = vdwg.mxu0
    %1988 = vmatpush.bf16.msra.mxu0 %v1171
    %1989 = vmatpush.bf16.msra.mxu0 %v1167
    %1990 = vmatpush.bf16.msra.mxu0 %v1163
    %1991 = vmatpush.bf16.msra.mxu0 %v1159
    %1992 = vmatpush.bf16.msra.mxu0 %v1155
    %1993 = vmatpush.bf16.msra.mxu0 %v1151
    %1994 = vmatpush.bf16.msra.mxu0 %v1147
    %1995 = vmatpush.bf16.msra.mxu0 %v1143
    %1996 = vmatmul.bf16.gmra.mxu0 %v356
    %v1997 = vpop.f32.mrf.mxu0
    %v1998 = vadd.f32 %v327, %v1997
    %v1999 = vpop.f32.mrf.mxu0
    %v2000 = vadd.f32 %v327, %v1999
    %2001 = vdwg.mxu0
    %2002 = vmatpush.bf16.msra.mxu0 %v1203
    %2003 = vmatpush.bf16.msra.mxu0 %v1199
    %2004 = vmatpush.bf16.msra.mxu0 %v1195
    %2005 = vmatpush.bf16.msra.mxu0 %v1191
    %2006 = vmatpush.bf16.msra.mxu0 %v1187
    %2007 = vmatpush.bf16.msra.mxu0 %v1183
    %2008 = vmatpush.bf16.msra.mxu0 %v1179
    %2009 = vmatpush.bf16.msra.mxu0 %v1175
    %2010 = vmatmul.bf16.gmra.mxu0 %v357
    %v2011 = vpop.f32.mrf.mxu0
    %v2012 = vadd.f32 %v1998, %v2011
    %v2013 = vpop.f32.mrf.mxu0
    %v2014 = vadd.f32 %v2000, %v2013
    %2015 = vdwg.mxu0
    %2016 = vmatpush.bf16.msra.mxu0 %v1235
    %2017 = vmatpush.bf16.msra.mxu0 %v1231
    %2018 = vmatpush.bf16.msra.mxu0 %v1227
    %2019 = vmatpush.bf16.msra.mxu0 %v1223
    %2020 = vmatpush.bf16.msra.mxu0 %v1219
    %2021 = vmatpush.bf16.msra.mxu0 %v1215
    %2022 = vmatpush.bf16.msra.mxu0 %v1211
    %2023 = vmatpush.bf16.msra.mxu0 %v1207
    %2024 = vmatmul.bf16.gmra.mxu0 %v358
    %v2025 = vpop.f32.mrf.mxu0
    %v2026 = vadd.f32 %v2012, %v2025
    %v2027 = vpop.f32.mrf.mxu0
    %v2028 = vadd.f32 %v2014, %v2027
    %2029 = vdwg.mxu0
    %2030 = vmatpush.bf16.msra.mxu0 %v1267
    %2031 = vmatpush.bf16.msra.mxu0 %v1263
    %2032 = vmatpush.bf16.msra.mxu0 %v1259
    %2033 = vmatpush.bf16.msra.mxu0 %v1255
    %2034 = vmatpush.bf16.msra.mxu0 %v1251
    %2035 = vmatpush.bf16.msra.mxu0 %v1247
    %2036 = vmatpush.bf16.msra.mxu0 %v1243
    %2037 = vmatpush.bf16.msra.mxu0 %v1239
    %2038 = vmatmul.bf16.gmra.mxu0 %v359
    %v2039 = vpop.f32.mrf.mxu0
    %v2040 = vadd.f32 %v2026, %v2039
    %v2041 = vpop.f32.mrf.mxu0
    %v2042 = vadd.f32 %v2028, %v2041
    %2043 = vdwg.mxu0
    %2044 = vmatpush.bf16.msra.mxu0 %v1299
    %2045 = vmatpush.bf16.msra.mxu0 %v1295
    %2046 = vmatpush.bf16.msra.mxu0 %v1291
    %2047 = vmatpush.bf16.msra.mxu0 %v1287
    %2048 = vmatpush.bf16.msra.mxu0 %v1283
    %2049 = vmatpush.bf16.msra.mxu0 %v1279
    %2050 = vmatpush.bf16.msra.mxu0 %v1275
    %2051 = vmatpush.bf16.msra.mxu0 %v1271
    %2052 = vmatmul.bf16.gmra.mxu0 %v360
    %v2053 = vpop.f32.mrf.mxu0
    %v2054 = vadd.f32 %v2040, %v2053
    %v2055 = vpop.f32.mrf.mxu0
    %v2056 = vadd.f32 %v2042, %v2055
    %2057 = vdwg.mxu0
    %2058 = vmatpush.bf16.msra.mxu0 %v1331
    %2059 = vmatpush.bf16.msra.mxu0 %v1327
    %2060 = vmatpush.bf16.msra.mxu0 %v1323
    %2061 = vmatpush.bf16.msra.mxu0 %v1319
    %2062 = vmatpush.bf16.msra.mxu0 %v1315
    %2063 = vmatpush.bf16.msra.mxu0 %v1311
    %2064 = vmatpush.bf16.msra.mxu0 %v1307
    %2065 = vmatpush.bf16.msra.mxu0 %v1303
    %2066 = vmatmul.bf16.gmra.mxu0 %v361
    %v2067 = vpop.f32.mrf.mxu0
    %v2068 = vadd.f32 %v2054, %v2067
    %v2069 = vpop.f32.mrf.mxu0
    %v2070 = vadd.f32 %v2056, %v2069
    %2071 = vdwg.mxu0
    %2072 = vmatpush.bf16.msra.mxu0 %v1363
    %2073 = vmatpush.bf16.msra.mxu0 %v1359
    %2074 = vmatpush.bf16.msra.mxu0 %v1355
    %2075 = vmatpush.bf16.msra.mxu0 %v1351
    %2076 = vmatpush.bf16.msra.mxu0 %v1347
    %2077 = vmatpush.bf16.msra.mxu0 %v1343
    %2078 = vmatpush.bf16.msra.mxu0 %v1339
    %2079 = vmatpush.bf16.msra.mxu0 %v1335
    %2080 = vmatmul.bf16.gmra.mxu0 %v362
    %v2081 = vpop.f32.mrf.mxu0
    %v2082 = vadd.f32 %v2068, %v2081
    %v2083 = vpop.f32.mrf.mxu0
    %v2084 = vadd.f32 %v2070, %v2083
    %2085 = vdwg.mxu0
    %2086 = vmatpush.bf16.msra.mxu0 %v1395
    %2087 = vmatpush.bf16.msra.mxu0 %v1391
    %2088 = vmatpush.bf16.msra.mxu0 %v1387
    %2089 = vmatpush.bf16.msra.mxu0 %v1383
    %2090 = vmatpush.bf16.msra.mxu0 %v1379
    %2091 = vmatpush.bf16.msra.mxu0 %v1375
    %2092 = vmatpush.bf16.msra.mxu0 %v1371
    %2093 = vmatpush.bf16.msra.mxu0 %v1367
    %2094 = vmatmul.bf16.gmra.mxu0 %v363
    %v2095 = vpop.f32.mrf.mxu0
    %v2096 = vadd.f32 %v2082, %v2095
    %v2097 = vpop.f32.mrf.mxu0
    %v2098 = vadd.f32 %v2084, %v2097
    %2099 = vdwg.mxu0
    %vm2100 = vcmp.gt.f32.partialorder %v1760, 0.0
    %vm2101 = vcmp.gt.f32.partialorder %v1872, 0.0
    %vm2102 = vcmp.gt.f32.partialorder %v1984, 0.0
    %vm2103 = vcmp.gt.f32.partialorder %v2096, 0.0
    %vm2104 = vcmp.gt.f32.partialorder %v1762, 0.0
    %vm2105 = vcmp.gt.f32.partialorder %v1874, 0.0
    %vm2106 = vcmp.gt.f32.partialorder %v1986, 0.0
    %vm2107 = vcmp.gt.f32.partialorder %v2098, 0.0
    %v2108 = vmul.f32 %v1760, 0.2
    %v2109 = vmul.f32 %v1872, 0.2
    %v2110 = vmul.f32 %v1984, 0.2
    %v2111 = vmul.f32 %v2096, 0.2
    %v2112 = vmul.f32 %v1762, 0.2
    %v2113 = vmul.f32 %v1874, 0.2
    %v2114 = vmul.f32 %v1986, 0.2
    %v2115 = vmul.f32 %v2098, 0.2
    %v2116 = vsel %vm2100, %v1760, %v2108
    %v2117 = vsel %vm2101, %v1872, %v2109
    %v2118 = vsel %vm2102, %v1984, %v2110
    %v2119 = vsel %vm2103, %v2096, %v2111
    %v2120 = vsel %vm2104, %v1762, %v2112
    %v2121 = vsel %vm2105, %v1874, %v2113
    %v2122 = vsel %vm2106, %v1986, %v2114
    %v2123 = vsel %vm2107, %v2098, %v2115
    %v2124 = vpack.c.bf16 %v2120, %v2116
    %v2125 = vpack.c.bf16 %v2121, %v2117
    %v2126 = vpack.c.bf16 %v2122, %v2118
    %v2127 = vpack.c.bf16 %v2123, %v2119
    %v2128 = vld [vmem:[#allocation4] sm:$0xff]
    %v2129 = vld [vmem:[#allocation4 + $0x8] sm:$0xff]
    %v2130 = vld [vmem:[#allocation4 + $0x10] sm:$0xff]
    %v2131 = vld [vmem:[#allocation4 + $0x18] sm:$0xff]
    %v2132 = vld [vmem:[#allocation4 + $0x20] sm:$0xff]
    %v2133 = vld [vmem:[#allocation4 + $0x28] sm:$0xff]
    %v2134 = vld [vmem:[#allocation4 + $0x30] sm:$0xff]
    %v2135 = vld [vmem:[#allocation4 + $0x38] sm:$0xff]
    %v2136 = vld [vmem:[#allocation4 + $0x40] sm:$0xff]
    %v2137 = vld [vmem:[#allocation4 + $0x48] sm:$0xff]
    %v2138 = vld [vmem:[#allocation4 + $0x50] sm:$0xff]
    %v2139 = vld [vmem:[#allocation4 + $0x58] sm:$0xff]
    %v2140 = vld [vmem:[#allocation4 + $0x60] sm:$0xff]
    %v2141 = vld [vmem:[#allocation4 + $0x68] sm:$0xff]
    %v2142 = vld [vmem:[#allocation4 + $0x70] sm:$0xff]
    %v2143 = vld [vmem:[#allocation4 + $0x78] sm:$0xff]
    %v2144 = vld [vmem:[#allocation4 + $0x80] sm:$0xff]
    %v2145 = vld [vmem:[#allocation4 + $0x88] sm:$0xff]
    %v2146 = vld [vmem:[#allocation4 + $0x90] sm:$0xff]
    %v2147 = vld [vmem:[#allocation4 + $0x98] sm:$0xff]
    %v2148 = vld [vmem:[#allocation4 + $0xa0] sm:$0xff]
    %v2149 = vld [vmem:[#allocation4 + $0xa8] sm:$0xff]
    %v2150 = vld [vmem:[#allocation4 + $0xb0] sm:$0xff]
    %v2151 = vld [vmem:[#allocation4 + $0xb8] sm:$0xff]
    %v2152 = vld [vmem:[#allocation4 + $0xc0] sm:$0xff]
    %v2153 = vld [vmem:[#allocation4 + $0xc8] sm:$0xff]
    %v2154 = vld [vmem:[#allocation4 + $0xd0] sm:$0xff]
    %v2155 = vld [vmem:[#allocation4 + $0xd8] sm:$0xff]
    %v2156 = vld [vmem:[#allocation4 + $0xe0] sm:$0xff]
    %v2157 = vld [vmem:[#allocation4 + $0xe8] sm:$0xff]
    %v2158 = vld [vmem:[#allocation4 + $0xf0] sm:$0xff]
    %v2159 = vld [vmem:[#allocation4 + $0xf8] sm:$0xff]
    %v2160 = vld [vmem:[#allocation4 + $0x100] sm:$0xff]
    %v2161 = vld [vmem:[#allocation4 + $0x108] sm:$0xff]
    %v2162 = vld [vmem:[#allocation4 + $0x110] sm:$0xff]
    %v2163 = vld [vmem:[#allocation4 + $0x118] sm:$0xff]
    %v2164 = vld [vmem:[#allocation4 + $0x120] sm:$0xff]
    %v2165 = vld [vmem:[#allocation4 + $0x128] sm:$0xff]
    %v2166 = vld [vmem:[#allocation4 + $0x130] sm:$0xff]
    %v2167 = vld [vmem:[#allocation4 + $0x138] sm:$0xff]
    %v2168 = vld [vmem:[#allocation4 + $0x140] sm:$0xff]
    %v2169 = vld [vmem:[#allocation4 + $0x148] sm:$0xff]
    %v2170 = vld [vmem:[#allocation4 + $0x150] sm:$0xff]
    %v2171 = vld [vmem:[#allocation4 + $0x158] sm:$0xff]
    %v2172 = vld [vmem:[#allocation4 + $0x160] sm:$0xff]
    %v2173 = vld [vmem:[#allocation4 + $0x168] sm:$0xff]
    %v2174 = vld [vmem:[#allocation4 + $0x170] sm:$0xff]
    %v2175 = vld [vmem:[#allocation4 + $0x178] sm:$0xff]
    %v2176 = vld [vmem:[#allocation4 + $0x180] sm:$0xff]
    %v2177 = vld [vmem:[#allocation4 + $0x188] sm:$0xff]
    %v2178 = vld [vmem:[#allocation4 + $0x190] sm:$0xff]
    %v2179 = vld [vmem:[#allocation4 + $0x198] sm:$0xff]
    %v2180 = vld [vmem:[#allocation4 + $0x1a0] sm:$0xff]
    %v2181 = vld [vmem:[#allocation4 + $0x1a8] sm:$0xff]
    %v2182 = vld [vmem:[#allocation4 + $0x1b0] sm:$0xff]
    %v2183 = vld [vmem:[#allocation4 + $0x1b8] sm:$0xff]
    %v2184 = vld [vmem:[#allocation4 + $0x1c0] sm:$0xff]
    %v2185 = vld [vmem:[#allocation4 + $0x1c8] sm:$0xff]
    %v2186 = vld [vmem:[#allocation4 + $0x1d0] sm:$0xff]
    %v2187 = vld [vmem:[#allocation4 + $0x1d8] sm:$0xff]
    %v2188 = vld [vmem:[#allocation4 + $0x1e0] sm:$0xff]
    %v2189 = vld [vmem:[#allocation4 + $0x1e8] sm:$0xff]
    %v2190 = vld [vmem:[#allocation4 + $0x1f0] sm:$0xff]
    %v2191 = vld [vmem:[#allocation4 + $0x1f8] sm:$0xff]
    %v2192 = vld [vmem:[%s4] sm:$0x3]
    %v2194 = vperm.slane %v2192, 0
    %v2195 = vperm.slane %v2192, 1
    %v2262 = vunpack.c.l.b16 %v2128
    %v2263 = vunpack.c.h.b16 %v2128
    %v2264 = vunpack.c.l.b16 %v2129
    %v2265 = vunpack.c.h.b16 %v2129
    %v2266 = vunpack.c.l.b16 %v2130
    %v2267 = vunpack.c.h.b16 %v2130
    %v2268 = vunpack.c.l.b16 %v2131
    %v2269 = vunpack.c.h.b16 %v2131
    %v2270 = vunpack.c.l.b16 %v2132
    %v2271 = vunpack.c.h.b16 %v2132
    %v2272 = vunpack.c.l.b16 %v2133
    %v2273 = vunpack.c.h.b16 %v2133
    %v2274 = vunpack.c.l.b16 %v2134
    %v2275 = vunpack.c.h.b16 %v2134
    %v2276 = vunpack.c.l.b16 %v2135
    %v2277 = vunpack.c.h.b16 %v2135
    %v2278 = vunpack.c.l.b16 %v2136
    %v2279 = vunpack.c.h.b16 %v2136
    %v2280 = vunpack.c.l.b16 %v2137
    %v2281 = vunpack.c.h.b16 %v2137
    %v2282 = vunpack.c.l.b16 %v2138
    %v2283 = vunpack.c.h.b16 %v2138
    %v2284 = vunpack.c.l.b16 %v2139
    %v2285 = vunpack.c.h.b16 %v2139
    %v2286 = vunpack.c.l.b16 %v2140
    %v2287 = vunpack.c.h.b16 %v2140
    %v2288 = vunpack.c.l.b16 %v2141
    %v2289 = vunpack.c.h.b16 %v2141
    %v2290 = vunpack.c.l.b16 %v2142
    %v2291 = vunpack.c.h.b16 %v2142
    %v2292 = vunpack.c.l.b16 %v2143
    %v2293 = vunpack.c.h.b16 %v2143
    %v2294 = vunpack.c.l.b16 %v2144
    %v2295 = vunpack.c.h.b16 %v2144
    %v2296 = vunpack.c.l.b16 %v2145
    %v2297 = vunpack.c.h.b16 %v2145
    %v2298 = vunpack.c.l.b16 %v2146
    %v2299 = vunpack.c.h.b16 %v2146
    %v2300 = vunpack.c.l.b16 %v2147
    %v2301 = vunpack.c.h.b16 %v2147
    %v2302 = vunpack.c.l.b16 %v2148
    %v2303 = vunpack.c.h.b16 %v2148
    %v2304 = vunpack.c.l.b16 %v2149
    %v2305 = vunpack.c.h.b16 %v2149
    %v2306 = vunpack.c.l.b16 %v2150
    %v2307 = vunpack.c.h.b16 %v2150
    %v2308 = vunpack.c.l.b16 %v2151
    %v2309 = vunpack.c.h.b16 %v2151
    %v2310 = vunpack.c.l.b16 %v2152
    %v2311 = vunpack.c.h.b16 %v2152
    %v2312 = vunpack.c.l.b16 %v2153
    %v2313 = vunpack.c.h.b16 %v2153
    %v2314 = vunpack.c.l.b16 %v2154
    %v2315 = vunpack.c.h.b16 %v2154
    %v2316 = vunpack.c.l.b16 %v2155
    %v2317 = vunpack.c.h.b16 %v2155
    %v2318 = vunpack.c.l.b16 %v2156
    %v2319 = vunpack.c.h.b16 %v2156
    %v2320 = vunpack.c.l.b16 %v2157
    %v2321 = vunpack.c.h.b16 %v2157
    %v2322 = vunpack.c.l.b16 %v2158
    %v2323 = vunpack.c.h.b16 %v2158
    %v2324 = vunpack.c.l.b16 %v2159
    %v2325 = vunpack.c.h.b16 %v2159
    %v2326 = vunpack.c.l.b16 %v2160
    %v2327 = vunpack.c.h.b16 %v2160
    %v2328 = vunpack.c.l.b16 %v2161
    %v2329 = vunpack.c.h.b16 %v2161
    %v2330 = vunpack.c.l.b16 %v2162
    %v2331 = vunpack.c.h.b16 %v2162
    %v2332 = vunpack.c.l.b16 %v2163
    %v2333 = vunpack.c.h.b16 %v2163
    %v2334 = vunpack.c.l.b16 %v2164
    %v2335 = vunpack.c.h.b16 %v2164
    %v2336 = vunpack.c.l.b16 %v2165
    %v2337 = vunpack.c.h.b16 %v2165
    %v2338 = vunpack.c.l.b16 %v2166
    %v2339 = vunpack.c.h.b16 %v2166
    %v2340 = vunpack.c.l.b16 %v2167
    %v2341 = vunpack.c.h.b16 %v2167
    %v2342 = vunpack.c.l.b16 %v2168
    %v2343 = vunpack.c.h.b16 %v2168
    %v2344 = vunpack.c.l.b16 %v2169
    %v2345 = vunpack.c.h.b16 %v2169
    %v2346 = vunpack.c.l.b16 %v2170
    %v2347 = vunpack.c.h.b16 %v2170
    %v2348 = vunpack.c.l.b16 %v2171
    %v2349 = vunpack.c.h.b16 %v2171
    %v2350 = vunpack.c.l.b16 %v2172
    %v2351 = vunpack.c.h.b16 %v2172
    %v2352 = vunpack.c.l.b16 %v2173
    %v2353 = vunpack.c.h.b16 %v2173
    %v2354 = vunpack.c.l.b16 %v2174
    %v2355 = vunpack.c.h.b16 %v2174
    %v2356 = vunpack.c.l.b16 %v2175
    %v2357 = vunpack.c.h.b16 %v2175
    %v2358 = vunpack.c.l.b16 %v2176
    %v2359 = vunpack.c.h.b16 %v2176
    %v2360 = vunpack.c.l.b16 %v2177
    %v2361 = vunpack.c.h.b16 %v2177
    %v2362 = vunpack.c.l.b16 %v2178
    %v2363 = vunpack.c.h.b16 %v2178
    %v2364 = vunpack.c.l.b16 %v2179
    %v2365 = vunpack.c.h.b16 %v2179
    %v2366 = vunpack.c.l.b16 %v2180
    %v2367 = vunpack.c.h.b16 %v2180
    %v2368 = vunpack.c.l.b16 %v2181
    %v2369 = vunpack.c.h.b16 %v2181
    %v2370 = vunpack.c.l.b16 %v2182
    %v2371 = vunpack.c.h.b16 %v2182
    %v2372 = vunpack.c.l.b16 %v2183
    %v2373 = vunpack.c.h.b16 %v2183
    %v2374 = vunpack.c.l.b16 %v2184
    %v2375 = vunpack.c.h.b16 %v2184
    %v2376 = vunpack.c.l.b16 %v2185
    %v2377 = vunpack.c.h.b16 %v2185
    %v2378 = vunpack.c.l.b16 %v2186
    %v2379 = vunpack.c.h.b16 %v2186
    %v2380 = vunpack.c.l.b16 %v2187
    %v2381 = vunpack.c.h.b16 %v2187
    %v2382 = vunpack.c.l.b16 %v2188
    %v2383 = vunpack.c.h.b16 %v2188
    %v2384 = vunpack.c.l.b16 %v2189
    %v2385 = vunpack.c.h.b16 %v2189
    %v2386 = vunpack.c.l.b16 %v2190
    %v2387 = vunpack.c.h.b16 %v2190
    %v2388 = vunpack.c.l.b16 %v2191
    %v2389 = vunpack.c.h.b16 %v2191
    %v2390 = vpack.c.b16 %v2264, %v2262
    %v2391 = vpack.c.b16 %v2265, %v2263
    %v2392 = vpack.c.b16 %v2268, %v2266
    %v2393 = vpack.c.b16 %v2269, %v2267
    %v2394 = vpack.c.b16 %v2272, %v2270
    %v2395 = vpack.c.b16 %v2273, %v2271
    %v2396 = vpack.c.b16 %v2276, %v2274
    %v2397 = vpack.c.b16 %v2277, %v2275
    %v2398 = vpack.c.b16 %v2280, %v2278
    %v2399 = vpack.c.b16 %v2281, %v2279
    %v2400 = vpack.c.b16 %v2284, %v2282
    %v2401 = vpack.c.b16 %v2285, %v2283
    %v2402 = vpack.c.b16 %v2288, %v2286
    %v2403 = vpack.c.b16 %v2289, %v2287
    %v2404 = vpack.c.b16 %v2292, %v2290
    %v2405 = vpack.c.b16 %v2293, %v2291
    %v2406 = vpack.c.b16 %v2296, %v2294
    %v2407 = vpack.c.b16 %v2297, %v2295
    %v2408 = vpack.c.b16 %v2300, %v2298
    %v2409 = vpack.c.b16 %v2301, %v2299
    %v2410 = vpack.c.b16 %v2304, %v2302
    %v2411 = vpack.c.b16 %v2305, %v2303
    %v2412 = vpack.c.b16 %v2308, %v2306
    %v2413 = vpack.c.b16 %v2309, %v2307
    %v2414 = vpack.c.b16 %v2312, %v2310
    %v2415 = vpack.c.b16 %v2313, %v2311
    %v2416 = vpack.c.b16 %v2316, %v2314
    %v2417 = vpack.c.b16 %v2317, %v2315
    %v2418 = vpack.c.b16 %v2320, %v2318
    %v2419 = vpack.c.b16 %v2321, %v2319
    %v2420 = vpack.c.b16 %v2324, %v2322
    %v2421 = vpack.c.b16 %v2325, %v2323
    %v2422 = vpack.c.b16 %v2328, %v2326
    %v2423 = vpack.c.b16 %v2329, %v2327
    %v2424 = vpack.c.b16 %v2332, %v2330
    %v2425 = vpack.c.b16 %v2333, %v2331
    %v2426 = vpack.c.b16 %v2336, %v2334
    %v2427 = vpack.c.b16 %v2337, %v2335
    %v2428 = vpack.c.b16 %v2340, %v2338
    %v2429 = vpack.c.b16 %v2341, %v2339
    %v2430 = vpack.c.b16 %v2344, %v2342
    %v2431 = vpack.c.b16 %v2345, %v2343
    %v2432 = vpack.c.b16 %v2348, %v2346
    %v2433 = vpack.c.b16 %v2349, %v2347
    %v2434 = vpack.c.b16 %v2352, %v2350
    %v2435 = vpack.c.b16 %v2353, %v2351
    %v2436 = vpack.c.b16 %v2356, %v2354
    %v2437 = vpack.c.b16 %v2357, %v2355
    %v2438 = vpack.c.b16 %v2360, %v2358
    %v2439 = vpack.c.b16 %v2361, %v2359
    %v2440 = vpack.c.b16 %v2364, %v2362
    %v2441 = vpack.c.b16 %v2365, %v2363
    %v2442 = vpack.c.b16 %v2368, %v2366
    %v2443 = vpack.c.b16 %v2369, %v2367
    %v2444 = vpack.c.b16 %v2372, %v2370
    %v2445 = vpack.c.b16 %v2373, %v2371
    %v2446 = vpack.c.b16 %v2376, %v2374
    %v2447 = vpack.c.b16 %v2377, %v2375
    %v2448 = vpack.c.b16 %v2380, %v2378
    %v2449 = vpack.c.b16 %v2381, %v2379
    %v2450 = vpack.c.b16 %v2384, %v2382
    %v2451 = vpack.c.b16 %v2385, %v2383
    %v2452 = vpack.c.b16 %v2388, %v2386
    %v2453 = vpack.c.b16 %v2389, %v2387
    %2518 = vmatpush.bf16.msra.mxu0 %v2404
    %2519 = vmatpush.bf16.msra.mxu0 %v2402
    %2520 = vmatpush.bf16.msra.mxu0 %v2400
    %2521 = vmatpush.bf16.msra.mxu0 %v2398
    %2522 = vmatpush.bf16.msra.mxu0 %v2396
    %2523 = vmatpush.bf16.msra.mxu0 %v2394
    %2524 = vmatpush.bf16.msra.mxu0 %v2392
    %2525 = vmatpush.bf16.msra.mxu0 %v2390
    %2526 = vmatmul.bf16.gmra.mxu0 %v2124
    %v2527 = vpop.f32.mrf.mxu0
    %v2528 = vadd.f32 %v2194, %v2527
    %v2529 = vpop.f32.mrf.mxu0
    %v2530 = vadd.f32 %v2194, %v2529
    %2531 = vdwg.mxu0
    %2532 = vmatpush.bf16.msra.mxu0 %v2420
    %2533 = vmatpush.bf16.msra.mxu0 %v2418
    %2534 = vmatpush.bf16.msra.mxu0 %v2416
    %2535 = vmatpush.bf16.msra.mxu0 %v2414
    %2536 = vmatpush.bf16.msra.mxu0 %v2412
    %2537 = vmatpush.bf16.msra.mxu0 %v2410
    %2538 = vmatpush.bf16.msra.mxu0 %v2408
    %2539 = vmatpush.bf16.msra.mxu0 %v2406
    %2540 = vmatmul.bf16.gmra.mxu0 %v2125
    %v2541 = vpop.f32.mrf.mxu0
    %v2542 = vadd.f32 %v2528, %v2541
    %v2543 = vpop.f32.mrf.mxu0
    %v2544 = vadd.f32 %v2530, %v2543
    %2545 = vdwg.mxu0
    %2546 = vmatpush.bf16.msra.mxu0 %v2436
    %2547 = vmatpush.bf16.msra.mxu0 %v2434
    %2548 = vmatpush.bf16.msra.mxu0 %v2432
    %2549 = vmatpush.bf16.msra.mxu0 %v2430
    %2550 = vmatpush.bf16.msra.mxu0 %v2428
    %2551 = vmatpush.bf16.msra.mxu0 %v2426
    %2552 = vmatpush.bf16.msra.mxu0 %v2424
    %2553 = vmatpush.bf16.msra.mxu0 %v2422
    %2554 = vmatmul.bf16.gmra.mxu0 %v2126
    %v2555 = vpop.f32.mrf.mxu0
    %v2556 = vadd.f32 %v2542, %v2555
    %v2557 = vpop.f32.mrf.mxu0
    %v2558 = vadd.f32 %v2544, %v2557
    %2559 = vdwg.mxu0
    %2560 = vmatpush.bf16.msra.mxu0 %v2452
    %2561 = vmatpush.bf16.msra.mxu0 %v2450
    %2562 = vmatpush.bf16.msra.mxu0 %v2448
    %2563 = vmatpush.bf16.msra.mxu0 %v2446
    %2564 = vmatpush.bf16.msra.mxu0 %v2444
    %2565 = vmatpush.bf16.msra.mxu0 %v2442
    %2566 = vmatpush.bf16.msra.mxu0 %v2440
    %2567 = vmatpush.bf16.msra.mxu0 %v2438
    %2568 = vmatmul.bf16.gmra.mxu0 %v2127
    %v2569 = vpop.f32.mrf.mxu0
    %v2570 = vadd.f32 %v2556, %v2569
    %v2571 = vpop.f32.mrf.mxu0
    %v2572 = vadd.f32 %v2558, %v2571
    %2573 = vdwg.mxu0
    %2574 = vmatpush.bf16.msra.mxu0 %v2405
    %2575 = vmatpush.bf16.msra.mxu0 %v2403
    %2576 = vmatpush.bf16.msra.mxu0 %v2401
    %2577 = vmatpush.bf16.msra.mxu0 %v2399
    %2578 = vmatpush.bf16.msra.mxu0 %v2397
    %2579 = vmatpush.bf16.msra.mxu0 %v2395
    %2580 = vmatpush.bf16.msra.mxu0 %v2393
    %2581 = vmatpush.bf16.msra.mxu0 %v2391
    %2582 = vmatmul.bf16.gmra.mxu0 %v2124
    %v2583 = vpop.f32.mrf.mxu0
    %v2584 = vadd.f32 %v2195, %v2583
    %v2585 = vpop.f32.mrf.mxu0
    %v2586 = vadd.f32 %v2195, %v2585
    %2587 = vdwg.mxu0
    %2588 = vmatpush.bf16.msra.mxu0 %v2421
    %2589 = vmatpush.bf16.msra.mxu0 %v2419
    %2590 = vmatpush.bf16.msra.mxu0 %v2417
    %2591 = vmatpush.bf16.msra.mxu0 %v2415
    %2592 = vmatpush.bf16.msra.mxu0 %v2413
    %2593 = vmatpush.bf16.msra.mxu0 %v2411
    %2594 = vmatpush.bf16.msra.mxu0 %v2409
    %2595 = vmatpush.bf16.msra.mxu0 %v2407
    %2596 = vmatmul.bf16.gmra.mxu0 %v2125
    %v2597 = vpop.f32.mrf.mxu0
    %v2598 = vadd.f32 %v2584, %v2597
    %v2599 = vpop.f32.mrf.mxu0
    %v2600 = vadd.f32 %v2586, %v2599
    %2601 = vdwg.mxu0
    %2602 = vmatpush.bf16.msra.mxu0 %v2437
    %2603 = vmatpush.bf16.msra.mxu0 %v2435
    %2604 = vmatpush.bf16.msra.mxu0 %v2433
    %2605 = vmatpush.bf16.msra.mxu0 %v2431
    %2606 = vmatpush.bf16.msra.mxu0 %v2429
    %2607 = vmatpush.bf16.msra.mxu0 %v2427
    %2608 = vmatpush.bf16.msra.mxu0 %v2425
    %2609 = vmatpush.bf16.msra.mxu0 %v2423
    %2610 = vmatmul.bf16.gmra.mxu0 %v2126
    %v2611 = vpop.f32.mrf.mxu0
    %v2612 = vadd.f32 %v2598, %v2611
    %v2613 = vpop.f32.mrf.mxu0
    %v2614 = vadd.f32 %v2600, %v2613
    %2615 = vdwg.mxu0
    %2616 = vmatpush.bf16.msra.mxu0 %v2453
    %2617 = vmatpush.bf16.msra.mxu0 %v2451
    %2618 = vmatpush.bf16.msra.mxu0 %v2449
    %2619 = vmatpush.bf16.msra.mxu0 %v2447
    %2620 = vmatpush.bf16.msra.mxu0 %v2445
    %2621 = vmatpush.bf16.msra.mxu0 %v2443
    %2622 = vmatpush.bf16.msra.mxu0 %v2441
    %2623 = vmatpush.bf16.msra.mxu0 %v2439
    %2624 = vmatmul.bf16.gmra.mxu0 %v2127
    %v2625 = vpop.f32.mrf.mxu0
    %v2626 = vadd.f32 %v2612, %v2625
    %v2627 = vpop.f32.mrf.mxu0
    %v2628 = vadd.f32 %v2614, %v2627
    %2629 = vdwg.mxu0
    %vm2630 = vcmp.gt.f32.partialorder %v2570, 0.0
    %vm2631 = vcmp.gt.f32.partialorder %v2626, 0.0
    %vm2632 = vcmp.gt.f32.partialorder %v2572, 0.0
    %vm2633 = vcmp.gt.f32.partialorder %v2628, 0.0
    %v2634 = vmul.f32 %v2570, 0.2
    %v2635 = vmul.f32 %v2626, 0.2
    %v2636 = vmul.f32 %v2572, 0.2
    %v2637 = vmul.f32 %v2628, 0.2
    %v2638 = vsel %vm2630, %v2570, %v2634
    %v2639 = vsel %vm2631, %v2626, %v2635
    %v2640 = vsel %vm2632, %v2572, %v2636
    %v2641 = vsel %vm2633, %v2628, %v2637
    %v2642 = vpack.c.bf16 %v2640, %v2638
    %v2643 = vpack.c.bf16 %v2641, %v2639
    %v2644 = vld [vmem:[%s5] sm:$0xf]
    %v2645 = vld [vmem:[%s5 + $0x4] sm:$0xf]
    %v2646 = vld [vmem:[%s5 + $0x8] sm:$0xf]
    %v2647 = vld [vmem:[%s5 + $0xc] sm:$0xf]
    %v2648 = vld [vmem:[%s5 + $0x10] sm:$0xf]
    %v2649 = vld [vmem:[%s5 + $0x14] sm:$0xf]
    %v2650 = vld [vmem:[%s5 + $0x18] sm:$0xf]
    %v2651 = vld [vmem:[%s5 + $0x1c] sm:$0xf]
    %v2652 = vld [vmem:[%s5 + $0x20] sm:$0xf]
    %v2653 = vld [vmem:[%s5 + $0x24] sm:$0xf]
    %v2654 = vld [vmem:[%s5 + $0x28] sm:$0xf]
    %v2655 = vld [vmem:[%s5 + $0x2c] sm:$0xf]
    %v2656 = vld [vmem:[%s5 + $0x30] sm:$0xf]
    %v2657 = vld [vmem:[%s5 + $0x34] sm:$0xf]
    %v2658 = vld [vmem:[%s5 + $0x38] sm:$0xf]
    %v2659 = vld [vmem:[%s5 + $0x3c] sm:$0xf]
    %v2660 = vld [vmem:[%s5 + $0x40] sm:$0xf]
    %v2661 = vld [vmem:[%s5 + $0x44] sm:$0xf]
    %v2662 = vld [vmem:[%s5 + $0x48] sm:$0xf]
    %v2663 = vld [vmem:[%s5 + $0x4c] sm:$0xf]
    %v2664 = vld [vmem:[%s5 + $0x50] sm:$0xf]
    %v2665 = vld [vmem:[%s5 + $0x54] sm:$0xf]
    %v2666 = vld [vmem:[%s5 + $0x58] sm:$0xf]
    %v2667 = vld [vmem:[%s5 + $0x5c] sm:$0xf]
    %v2668 = vld [vmem:[%s5 + $0x60] sm:$0xf]
    %v2669 = vld [vmem:[%s5 + $0x64] sm:$0xf]
    %v2670 = vld [vmem:[%s5 + $0x68] sm:$0xf]
    %v2671 = vld [vmem:[%s5 + $0x6c] sm:$0xf]
    %v2672 = vld [vmem:[%s5 + $0x70] sm:$0xf]
    %v2673 = vld [vmem:[%s5 + $0x74] sm:$0xf]
    %v2674 = vld [vmem:[%s5 + $0x78] sm:$0xf]
    %v2675 = vld [vmem:[%s5 + $0x7c] sm:$0xf]
    %v2676 = vld [vmem:[%s6] sm:$0x1]
    %v2678 = vperm.slane %v2676, 0
    %v2712 = vunpack.c.l.b16 %v2644
    %v2713 = vunpack.c.l.b16 %v2645
    %v2714 = vunpack.c.l.b16 %v2646
    %v2715 = vunpack.c.l.b16 %v2647
    %v2716 = vunpack.c.l.b16 %v2648
    %v2717 = vunpack.c.l.b16 %v2649
    %v2718 = vunpack.c.l.b16 %v2650
    %v2719 = vunpack.c.l.b16 %v2651
    %v2720 = vunpack.c.l.b16 %v2652
    %v2721 = vunpack.c.l.b16 %v2653
    %v2722 = vunpack.c.l.b16 %v2654
    %v2723 = vunpack.c.l.b16 %v2655
    %v2724 = vunpack.c.l.b16 %v2656
    %v2725 = vunpack.c.l.b16 %v2657
    %v2726 = vunpack.c.l.b16 %v2658
    %v2727 = vunpack.c.l.b16 %v2659
    %v2728 = vunpack.c.l.b16 %v2660
    %v2729 = vunpack.c.l.b16 %v2661
    %v2730 = vunpack.c.l.b16 %v2662
    %v2731 = vunpack.c.l.b16 %v2663
    %v2732 = vunpack.c.l.b16 %v2664
    %v2733 = vunpack.c.l.b16 %v2665
    %v2734 = vunpack.c.l.b16 %v2666
    %v2735 = vunpack.c.l.b16 %v2667
    %v2736 = vunpack.c.l.b16 %v2668
    %v2737 = vunpack.c.l.b16 %v2669
    %v2738 = vunpack.c.l.b16 %v2670
    %v2739 = vunpack.c.l.b16 %v2671
    %v2740 = vunpack.c.l.b16 %v2672
    %v2741 = vunpack.c.l.b16 %v2673
    %v2742 = vunpack.c.l.b16 %v2674
    %v2743 = vunpack.c.l.b16 %v2675
    %v2744 = vpack.c.b16 %v2713, %v2712
    %v2745 = vpack.c.b16 %v2715, %v2714
    %v2746 = vpack.c.b16 %v2717, %v2716
    %v2747 = vpack.c.b16 %v2719, %v2718
    %v2748 = vpack.c.b16 %v2721, %v2720
    %v2749 = vpack.c.b16 %v2723, %v2722
    %v2750 = vpack.c.b16 %v2725, %v2724
    %v2751 = vpack.c.b16 %v2727, %v2726
    %v2752 = vpack.c.b16 %v2729, %v2728
    %v2753 = vpack.c.b16 %v2731, %v2730
    %v2754 = vpack.c.b16 %v2733, %v2732
    %v2755 = vpack.c.b16 %v2735, %v2734
    %v2756 = vpack.c.b16 %v2737, %v2736
    %v2757 = vpack.c.b16 %v2739, %v2738
    %v2758 = vpack.c.b16 %v2741, %v2740
    %v2759 = vpack.c.b16 %v2743, %v2742
    %2776 = vmatpush.bf16.msra.mxu0 %v2751
    %2777 = vmatpush.bf16.msra.mxu0 %v2750
    %2778 = vmatpush.bf16.msra.mxu0 %v2749
    %2779 = vmatpush.bf16.msra.mxu0 %v2748
    %2780 = vmatpush.bf16.msra.mxu0 %v2747
    %2781 = vmatpush.bf16.msra.mxu0 %v2746
    %2782 = vmatpush.bf16.msra.mxu0 %v2745
    %2783 = vmatpush.bf16.msra.mxu0 %v2744
    %2784 = vmatmul.bf16.gmra.mxu0 %v2642
    %v2785 = vpop.f32.mrf.mxu0
    %v2786 = vadd.f32 %v2678, %v2785
    %v2787 = vpop.f32.mrf.mxu0
    %v2788 = vadd.f32 %v2678, %v2787
    %2789 = vdwg.mxu0
    %2790 = vmatpush.bf16.msra.mxu0 %v2759
    %2791 = vmatpush.bf16.msra.mxu0 %v2758
    %2792 = vmatpush.bf16.msra.mxu0 %v2757
    %2793 = vmatpush.bf16.msra.mxu0 %v2756
    %2794 = vmatpush.bf16.msra.mxu0 %v2755
    %2795 = vmatpush.bf16.msra.mxu0 %v2754
    %2796 = vmatpush.bf16.msra.mxu0 %v2753
    %2797 = vmatpush.bf16.msra.mxu0 %v2752
    %2798 = vmatmul.bf16.gmra.mxu0 %v2643
    %v2799 = vpop.f32.mrf.mxu0
    %v2800 = vadd.f32 %v2786, %v2799
    %v2801 = vpop.f32.mrf.mxu0
    %v2802 = vadd.f32 %v2788, %v2801
    %2803 = vdwg.mxu0
    %v2804 = vxor.u32 %v2800, 2147483648
    %v2805 = vxor.u32 %v2802, 2147483648
    %v2806 = vmul.f32 %v2804, 1.442695
    %v2807 = vpow.pop %v2806
    %v2808 = vmul.f32 %v2805, 1.442695
    %v2809 = vpow.pop %v2808
    %v2810 = vadd.f32 %v2807, 1.0
    %v2811 = vadd.f32 %v2809, 1.0
    %v2812 = vrcp.pop %v2810
    %v2813 = vmul.f32 %v2810, %v2812
    %v2814 = vsub.f32 1.0, %v2813
    %v2815 = vmul.f32 %v2812, %v2814
    %v2816 = vadd.f32 %v2812, %v2815
    %vm2817 = vweird.f32 %v2810
    %vm2818 = vweird.f32 %v2812
    %vm2819 = vmor %vm2817, %vm2818
    %v2820 = vsel %vm2819, %v2812, %v2816
    %v2821 = vand.u32 2147483647, %v2810
    %vm2822 = vcmp.eq.f32.partialorder %v2821, 8.507059e+37
    %v2823 = vand.u32 %v2810, 2147483648
    %v2824 = vor.u32 1.1754944e-38, %v2823
    %v2825 = vsel %vm2822, %v2824, %v2820
    %v2826 = vmul.f32 1.0, %v2825
    %v2827 = vrcp.pop %v2811
    %v2828 = vmul.f32 %v2811, %v2827
    %v2829 = vsub.f32 1.0, %v2828
    %v2830 = vmul.f32 %v2827, %v2829
    %v2831 = vadd.f32 %v2827, %v2830
    %vm2832 = vweird.f32 %v2811
    %vm2833 = vweird.f32 %v2827
    %vm2834 = vmor %vm2832, %vm2833
    %v2835 = vsel %vm2834, %v2827, %v2831
    %v2836 = vand.u32 2147483647, %v2811
    %vm2837 = vcmp.eq.f32.partialorder %v2836, 8.507059e+37
    %v2838 = vand.u32 %v2811, 2147483648
    %v2839 = vor.u32 1.1754944e-38, %v2838
    %v2840 = vsel %vm2837, %v2839, %v2835
    %v2841 = vmul.f32 1.0, %v2840
    %2842 = vst [vmem:[%s7] sm:$0xff] %v2826
    %2843 = vst [vmem:[%s7 + $0x8] sm:$0xff] %v2841
    // Predicated region
    $region38: #{forward.1} parent=1 // pred_check
      _
    $region39: #{forward.1} parent=1 // pred_check_branch
      %2845 = sbr.rel (0) target = $region41
    $region40: #{forward.1} parent=1 // pred_region
      _
    $region41: #{forward.1} parent=1 // pred_fallthru
      _
    // Predicated region
    $region42: #{forward.1} parent=1 // pred_check
      _
    $region43: #{forward.1} parent=1 // pred_check_branch
      %2847 = sbr.rel (0) target = $region45
    $region44: #{forward.1} parent=1 // pred_region
      _
    $region45: #{forward.1} parent=1 // pred_fallthru
      _
    %2848 = vsyncpa [#allocation3], 1
    %2849 = vsyncpa [#allocation5], 1

</llo_original>
